<compile_context>
chip_gen: v5e
topology: v5e:2x2
jax: 0.10.0
libtpu: 0.0.40
codegen_flags: <defaults>
</compile_context>

<pallas_src>
import jax
import jax.numpy as jnp
from jax.experimental import pallas as pl
from jax.experimental.pallas import tpu as pltpu

EPS_BN = 1e-5   # torch BatchNorm1d default eps


def _gcn_layer_kernel(x_ref, oh_src_ref, oh_dst_s_ref, e_emb_ref,
                      w_lin_ref, b_lin_ref, bn_g_ref, bn_b_ref,
                      out_ref,
                      xw_ref, acc_ref):
    """One GCNConv + BatchNorm + ReLU layer; grid = edge tiles (reduction)."""
    k = pl.program_id(0)

    # ---- first edge tile: node Linear (bf16 x bf16 -> f32 acc), zero the acc ----
    @pl.when(k == 0)
    def _init():
        xw = jnp.dot(x_ref[...], w_lin_ref[...],
                     preferred_element_type=jnp.float32) + b_lin_ref[...]
        xw_ref[...] = xw.astype(jnp.bfloat16)        # resident across edge tiles
        acc_ref[...] = jnp.zeros_like(acc_ref)

    # ---- per-edge-tile message computation ----
    # gather x_j = (x @ W + b)[row[e]] : int8 {0,1} one-hot stored in HBM
    # (halves the dominant HBM stream), widened to bf16 just before the MXU.
    x_j = jnp.dot(oh_src_ref[...].astype(jnp.bfloat16), xw_ref[...],
                  preferred_element_type=jnp.float32)
    # relu(x_j + edge_embedding); bond encoder is layer-invariant and hoisted
    # to the wrapper, streamed here as a bf16 per-edge-tile input.
    m = jnp.maximum(x_j + e_emb_ref[...], 0.0)
    # scatter-add into target nodes.  oh_dst_s is laid out (N, E_tile) with its
    # columns pre-scaled by coef = norm * edge_weight, so the per-edge scale is
    # absorbed into this MXU matmul (no coef stream / VPU multiply, no in-kernel
    # transpose).
    acc_ref[...] += jnp.dot(oh_dst_s_ref[...], m.astype(jnp.bfloat16),
                            preferred_element_type=jnp.float32)

    # ---- last edge tile: BatchNorm (batch stats, biased var) + ReLU ----
    @pl.when(k == pl.num_programs(0) - 1)
    def _finalize():
        y = acc_ref[...]
        mu = jnp.mean(y, axis=0, keepdims=True)
        var = jnp.mean((y - mu) * (y - mu), axis=0, keepdims=True)
        y = (y - mu) * jax.lax.rsqrt(var + EPS_BN) * bn_g_ref[...] + bn_b_ref[...]
        out_ref[...] = jnp.maximum(y, 0.0).astype(out_ref.dtype)
        # dropout p=0.0 -> identity; use_residual=False (`residual` is undefined
        # in the reference module).
        # TODO(synk): BatchNorm running_mean/var buffers are not updated
        # (training-mode batch statistics only; eval-mode parity not covered).


def _layer_vmem_bytes(n, c_in, c_out, edge_tile):
    """Rough double-buffered VMEM residency for one layer call (bytes)."""
    dbl = 2
    inputs = dbl * (edge_tile * n * 1          # oh_src   (int8)
                    + n * edge_tile * 2        # oh_dst_s (bf16)
                    + edge_tile * c_out * 2    # e_emb    (bf16)
                    + n * c_in * 2             # x        (bf16)
                    + c_in * c_out * 2         # w_lin    (bf16)
                    + 3 * c_out * 4)           # b_lin, bn_g, bn_b (f32)
    outputs = dbl * n * c_out * 2              # out (bf16)
    scratch = n * c_out * (2 + 4)              # xw (bf16) + acc (f32)
    return inputs + outputs + scratch


def gcn_conv_layer(x, oh_src, oh_dst_s, e_emb, params, *,
                   edge_tile=256, vmem_limit_bytes=48 * 1024 * 1024):
    """One GCNConv + BN + ReLU layer as a single edge-tiled pallas_call.

    x        : (N, C_in)      bf16  node features
    oh_src   : (E_pad, N)     int8  one-hot of edge sources (row); pad rows = 0
    oh_dst_s : (N, E_pad)     bf16  transposed one-hot of edge targets (col),
                                    columns pre-scaled by coef = norm * edge_weight
    e_emb    : (E_pad, C_out) bf16  shared bond-encoder output (hoisted)
    """
    N, C_in = x.shape
    E_pad = oh_src.shape[0]
    C_out = params["w_lin"].shape[1]
    assert E_pad % edge_tile == 0, "pad E to a multiple of edge_tile"
    assert e_emb.shape[1] == C_out, "bond-encoder dim must equal layer C_out"
    assert _layer_vmem_bytes(N, C_in, C_out, edge_tile) < vmem_limit_bytes, (
        "edge_tile too large for the VMEM budget; shrink edge_tile")
    n_e_tiles = E_pad // edge_tile

    grid_spec = pltpu.PrefetchScalarGridSpec(
        num_scalar_prefetch=0,
        grid=(n_e_tiles,),
        in_specs=[
            pl.BlockSpec((N, C_in),          lambda k: (0, 0)),   # x        (bf16)
            pl.BlockSpec((edge_tile, N),     lambda k: (k, 0)),   # oh_src   (int8)
            pl.BlockSpec((N, edge_tile),     lambda k: (0, k)),   # oh_dst_s (bf16)
            pl.BlockSpec((edge_tile, C_out), lambda k: (k, 0)),   # e_emb    (bf16)
            pl.BlockSpec((C_in, C_out),      lambda k: (0, 0)),   # w_lin    (bf16)
            pl.BlockSpec((1, C_out),         lambda k: (0, 0)),   # b_lin
            pl.BlockSpec((1, C_out),         lambda k: (0, 0)),   # bn_gamma
            pl.BlockSpec((1, C_out),         lambda k: (0, 0)),   # bn_beta
        ],
        out_specs=pl.BlockSpec((N, C_out), lambda k: (0, 0)),
        scratch_shapes=[
            pltpu.VMEM((N, C_out), jnp.bfloat16),   # x @ W + b, resident
            pltpu.VMEM((N, C_out), jnp.float32),    # scatter-add accumulator
        ],
    )
    # TODO(synk): for non-toy N, replace the dense one-hot gather/scatter with a
    # scalar-prefetched indexed gather + CSR segment-sum scatter (O(E*C) instead
    # of O(E*N*C)); at these sizes the dense form is exact, MXU-friendly and
    # fits comfortably in VMEM, so it is kept (stored int8 to halve HBM bytes).
    # TODO(synk): on v7x, add a leading "parallel" node-tile grid axis (split
    # acc/out over N, emit per-tile sum/sumsq and finish BN+ReLU outside) so
    # both TensorCores are used; neutral on v5e/v6e, so omitted here.
    return pl.pallas_call(
        _gcn_layer_kernel,
        out_shape=jax.ShapeDtypeStruct((N, C_out), jnp.bfloat16),
        grid_spec=grid_spec,
        compiler_params=pltpu.CompilerParams(
            dimension_semantics=("arbitrary",),   # edge axis is a reduction
            vmem_limit_bytes=vmem_limit_bytes,    # <= 48 MiB: safe on v7x too
        ),
    )(x, oh_src, oh_dst_s, e_emb,
      params["w_lin"], params["b_lin"], params["bn_g"], params["bn_b"])


def _reference_forward(x, row, col, edge_attr, edge_weight,
                       w_enc, b_enc, layer_params):
    """Pure-JAX f32 reference with identical semantics (tolerance check)."""
    n = x.shape[0]
    e_emb = edge_attr @ w_enc + b_enc
    deg = jnp.zeros((n,), jnp.float32).at[row].add(1.0)
    dis = jnp.where(deg > 0, 1.0 / jnp.sqrt(jnp.maximum(deg, 1.0)), 0.0)
    coef = (dis[row] * dis[col] * edge_weight)[:, None]
    h = x
    for p in layer_params:
        xw = h @ p["w_lin"] + p["b_lin"]
        m = coef * jnp.maximum(xw[row] + e_emb, 0.0)
        agg = jnp.zeros((n, xw.shape[1]), jnp.float32).at[col].add(m)
        mu = agg.mean(axis=0, keepdims=True)
        var = ((agg - mu) ** 2).mean(axis=0, keepdims=True)
        y = (agg - mu) * jax.lax.rsqrt(var + EPS_BN) * p["bn_g"] + p["bn_b"]
        h = jnp.maximum(y, 0.0)
    return h


if __name__ == "__main__":
    # BaseGCN(in_features=16, num_layers=3, hidden=32, out_feature=32,
    #         use_bn=True, dropout=0.0, use_residual=False,
    #         edge_encoder=Linear(4, 32))
    N, E_RAW = 64, 500            # E not a tile multiple -> exercises padding
    IN_F, HIDDEN, OUT_F = 16, 32, 32
    EDGE_DIM = 4
    NUM_LAYERS = 3
    EDGE_TILE = 256               # 256-multiple matches the v6e/v7x MXU

    key = jax.random.PRNGKey(0)
    keys = jax.random.split(key, 6 + NUM_LAYERS)
    k_x, k_row, k_col, k_ea, k_ew, k_enc = keys[:6]
    k_layers = keys[6:]

    x = jax.random.normal(k_x, (N, IN_F), jnp.float32)
    row = jax.random.randint(k_row, (E_RAW,), 0, N)   # edge_index[0] (source j)
    col = jax.random.randint(k_col, (E_RAW,), 0, N)   # edge_index[1] (target i)
    edge_attr = jax.random.normal(k_ea, (E_RAW, EDGE_DIM), jnp.float32)
    edge_weight = jax.random.uniform(k_ew, (E_RAW,), jnp.float32, 0.5, 1.5)  # ndim==1

    # shared bond encoder (same module instance passed to every conv layer),
    # weights pre-transposed to (in, out) so the encoder is x @ W + b
    w_enc = jax.random.normal(k_enc, (EDGE_DIM, HIDDEN), jnp.float32) / jnp.sqrt(float(EDGE_DIM))
    b_enc = jnp.zeros((1, HIDDEN), jnp.float32)

    def init_layer(k, c_in, c_out):
        return dict(
            w_lin=jax.random.normal(k, (c_in, c_out), jnp.float32) / jnp.sqrt(float(c_in)),
            b_lin=jnp.zeros((1, c_out), jnp.float32),
            bn_g=jnp.ones((1, c_out), jnp.float32),    # BatchNorm1d default init
            bn_b=jnp.zeros((1, c_out), jnp.float32),
        )

    dims = [IN_F] + [HIDDEN] * (NUM_LAYERS - 1) + [OUT_F]   # 16 -> 32 -> 32 -> 32
    params_f32 = [init_layer(k_layers[i], dims[i], dims[i + 1])
                  for i in range(NUM_LAYERS)]
    # kernel-side copies: Linear weights in bf16 (full-rate MXU), rest f32
    params_krn = [dict(w_lin=p["w_lin"].astype(jnp.bfloat16),
                       b_lin=p["b_lin"], bn_g=p["bn_g"], bn_b=p["bn_b"])
                  for p in params_f32]

    # ---- graph-dependent, layer-invariant preprocessing (hoisted, run once) ----
    E_PAD = ((E_RAW + EDGE_TILE - 1) // EDGE_TILE) * EDGE_TILE
    pad = E_PAD - E_RAW
    deg = jnp.zeros((N,), jnp.float32).at[row].add(1.0)            # degree(row, N)
    dis = jnp.where(deg > 0, 1.0 / jnp.sqrt(jnp.maximum(deg, 1.0)), 0.0)
    coef = dis[row] * dis[col] * edge_weight                       # norm * edge_weight
    # gather one-hot, int8 {0,1} in HBM (exact); padded rows are all-zero
    oh_src = jnp.pad(jax.nn.one_hot(row, N, dtype=jnp.int8), ((0, pad), (0, 0)))
    # scatter one-hot, already transposed and column-scaled by coef;
    # padded columns are all-zero so padded edges contribute nothing
    oh_dst_s = (col[None, :] == jnp.arange(N)[:, None]).astype(jnp.float32) * coef[None, :]
    oh_dst_s = jnp.pad(oh_dst_s, ((0, 0), (0, pad))).astype(jnp.bfloat16)   # (N, E_PAD)
    # shared bond encoder output, computed once for all layers; padded rows zero
    e_emb = jnp.pad(edge_attr @ w_enc + b_enc, ((0, pad), (0, 0))).astype(jnp.bfloat16)

    @jax.jit
    def base_gcn_forward(x, oh_src, oh_dst_s, e_emb):
        h = x.astype(jnp.bfloat16)
        for p in params_krn:   # use_bn=True, dropout=0.0, use_residual=False
            h = gcn_conv_layer(h, oh_src, oh_dst_s, e_emb, p, edge_tile=EDGE_TILE)
        return h

    out = jax.block_until_ready(base_gcn_forward(x, oh_src, oh_dst_s, e_emb))
    assert out.shape == (N, OUT_F) and bool(jnp.all(jnp.isfinite(out)))

    # tolerance check vs. the f32 pure-JAX reference (kernel runs bf16 operands
    # with f32 accumulation, so bit-exactness is not expected -- generous bound)
    ref = _reference_forward(x, row, col, edge_attr, edge_weight,
                             w_enc, b_enc, params_f32)
    rel = float(jnp.max(jnp.abs(out.astype(jnp.float32) - ref))
                / (jnp.max(jnp.abs(ref)) + 1e-6))
    assert rel < 0.1, f"kernel/reference mismatch: max-normalized err {rel:.4f}"
    print("KERNEL_OK")
</pallas_src>

<mosaic_0001>
module attributes {stable_mosaic.version = 11 : i64} {
  func.func @_gcn_layer_kernel(%arg0: i32, %arg1: memref<64x32xbf16, #tpu.memory_space<vmem>>, %arg2: memref<256x64xi8, #tpu.memory_space<vmem>>, %arg3: memref<64x256xbf16, #tpu.memory_space<vmem>>, %arg4: memref<256x32xbf16, #tpu.memory_space<vmem>>, %arg5: memref<32x32xbf16, #tpu.memory_space<vmem>>, %arg6: memref<1x32xf32, #tpu.memory_space<vmem>>, %arg7: memref<1x32xf32, #tpu.memory_space<vmem>>, %arg8: memref<1x32xf32, #tpu.memory_space<vmem>>, %arg9: memref<64x32xbf16, #tpu.memory_space<vmem>>, %arg10: memref<64x32xbf16, #tpu.memory_space<vmem>>, %arg11: memref<64x32xf32, #tpu.memory_space<vmem>>) attributes {dimension_semantics = [#tpu.dimension_semantics<arbitrary>], iteration_bounds = array<i64: 2>, scalar_prefetch = 0 : i64, scratch_operands = 2 : i64, tpu.core_type = #tpu.core_type<tc>, window_params = [{pipeline_mode = #tpu.pipeline_mode<synchronous>, transform_indices = @transform_0, window_bounds = array<i64: 64, 32>}, {transform_indices = @transform_1, window_bounds = array<i64: 256, 64>}, {transform_indices = @transform_2, window_bounds = array<i64: 64, 256>}, {transform_indices = @transform_3, window_bounds = array<i64: 256, 32>}, {pipeline_mode = #tpu.pipeline_mode<synchronous>, transform_indices = @transform_4, window_bounds = array<i64: 32, 32>}, {pipeline_mode = #tpu.pipeline_mode<synchronous>, transform_indices = @transform_5, window_bounds = array<i64: 1, 32>}, {pipeline_mode = #tpu.pipeline_mode<synchronous>, transform_indices = @transform_6, window_bounds = array<i64: 1, 32>}, {pipeline_mode = #tpu.pipeline_mode<synchronous>, transform_indices = @transform_7, window_bounds = array<i64: 1, 32>}, {pipeline_mode = #tpu.pipeline_mode<synchronous>, transform_indices = @transform_8, window_bounds = array<i64: 64, 32>}]} {
    %c0_i32 = arith.constant 0 : i32
    %0 = arith.cmpi eq, %arg0, %c0_i32 : i32
    %1 = arith.extui %0 : i1 to i32
    %c0_i32_0 = arith.constant 0 : i32
    %2 = arith.cmpi ne, %1, %c0_i32_0 : i32
    scf.if %2 {
      %c0_15 = arith.constant 0 : index
      %c0_16 = arith.constant 0 : index
      %21 = vector.load %arg1[%c0_15, %c0_16] : memref<64x32xbf16, #tpu.memory_space<vmem>>, vector<64x32xbf16>
      %c0_17 = arith.constant 0 : index
      %c0_18 = arith.constant 0 : index
      %22 = vector.load %arg5[%c0_17, %c0_18] : memref<32x32xbf16, #tpu.memory_space<vmem>>, vector<32x32xbf16>
      %cst_19 = arith.constant dense<0.000000e+00> : vector<64x32xf32>
      %23 = tpu.matmul %21, %22, %cst_19 {dimension_numbers = #tpu.dot_dimension_numbers<[1], [0], [0], [1], [0, 0, 1, 1], [], []>} : vector<64x32xbf16>, vector<32x32xbf16>, vector<64x32xf32> -> vector<64x32xf32>
      %c0_20 = arith.constant 0 : index
      %c0_21 = arith.constant 0 : index
      %24 = vector.load %arg6[%c0_20, %c0_21] : memref<1x32xf32, #tpu.memory_space<vmem>>, vector<1x32xf32>
      %25 = vector.broadcast %24 : vector<1x32xf32> to vector<64x32xf32>
      %26 = arith.addf %23, %25 : vector<64x32xf32>
      %27 = arith.truncf %26 : vector<64x32xf32> to vector<64x32xbf16>
      %c0_22 = arith.constant 0 : index
      %c0_23 = arith.constant 0 : index
      %28 = vector.load %arg10[%c0_22, %c0_23] : memref<64x32xbf16, #tpu.memory_space<vmem>>, vector<64x32xbf16>
      tpu.vector_store %arg10[%c0_22, %c0_23], %27 {strides = array<i32>} : memref<64x32xbf16, #tpu.memory_space<vmem>>, vector<64x32xbf16>,
      %cst_24 = arith.constant 0.000000e+00 : f32
      %29 = vector.broadcast %cst_24 : f32 to vector<64x32xf32>
      %c0_25 = arith.constant 0 : index
      %c0_26 = arith.constant 0 : index
      %30 = vector.load %arg11[%c0_25, %c0_26] : memref<64x32xf32, #tpu.memory_space<vmem>>, vector<64x32xf32>
      tpu.vector_store %arg11[%c0_25, %c0_26], %29 {strides = array<i32>} : memref<64x32xf32, #tpu.memory_space<vmem>>, vector<64x32xf32>,
    } else {
    }
    %c0 = arith.constant 0 : index
    %c0_1 = arith.constant 0 : index
    %3 = vector.load %arg2[%c0, %c0_1] : memref<256x64xi8, #tpu.memory_space<vmem>>, vector<256x64xi8>
    %4 = arith.sitofp %3 : vector<256x64xi8> to vector<256x64xbf16>
    %c0_2 = arith.constant 0 : index
    %c0_3 = arith.constant 0 : index
    %5 = vector.load %arg10[%c0_2, %c0_3] : memref<64x32xbf16, #tpu.memory_space<vmem>>, vector<64x32xbf16>
    %cst = arith.constant dense<0.000000e+00> : vector<256x32xf32>
    %6 = tpu.matmul %4, %5, %cst {dimension_numbers = #tpu.dot_dimension_numbers<[1], [0], [0], [1], [0, 0, 1, 1], [], []>} : vector<256x64xbf16>, vector<64x32xbf16>, vector<256x32xf32> -> vector<256x32xf32>
    %c0_4 = arith.constant 0 : index
    %c0_5 = arith.constant 0 : index
    %7 = vector.load %arg4[%c0_4, %c0_5] : memref<256x32xbf16, #tpu.memory_space<vmem>>, vector<256x32xbf16>
    %8 = arith.extf %7 : vector<256x32xbf16> to vector<256x32xf32>
    %9 = arith.addf %6, %8 : vector<256x32xf32>
    %cst_6 = arith.constant 0.000000e+00 : f32
    %10 = vector.broadcast %cst_6 : f32 to vector<256x32xf32>
    %11 = arith.maximumf %9, %10 : vector<256x32xf32>
    %c0_7 = arith.constant 0 : index
    %c0_8 = arith.constant 0 : index
    %12 = vector.load %arg11[%c0_7, %c0_8] : memref<64x32xf32, #tpu.memory_space<vmem>>, vector<64x32xf32>
    %c0_9 = arith.constant 0 : index
    %c0_10 = arith.constant 0 : index
    %13 = vector.load %arg3[%c0_9, %c0_10] : memref<64x256xbf16, #tpu.memory_space<vmem>>, vector<64x256xbf16>
    %14 = arith.truncf %11 : vector<256x32xf32> to vector<256x32xbf16>
    %cst_11 = arith.constant dense<0.000000e+00> : vector<64x32xf32>
    %15 = tpu.matmul %13, %14, %cst_11 {dimension_numbers = #tpu.dot_dimension_numbers<[1], [0], [0], [1], [0, 0, 1, 1], [], []>} : vector<64x256xbf16>, vector<256x32xbf16>, vector<64x32xf32> -> vector<64x32xf32>
    %16 = arith.addf %12, %15 : vector<64x32xf32>
    %c0_12 = arith.constant 0 : index
    %c0_13 = arith.constant 0 : index
    %17 = vector.load %arg11[%c0_12, %c0_13] : memref<64x32xf32, #tpu.memory_space<vmem>>, vector<64x32xf32>
    tpu.vector_store %arg11[%c0_12, %c0_13], %16 {strides = array<i32>} : memref<64x32xf32, #tpu.memory_space<vmem>>, vector<64x32xf32>,
    %c1_i32 = arith.constant 1 : i32
    %18 = arith.cmpi eq, %arg0, %c1_i32 : i32
    %19 = arith.extui %18 : i1 to i32
    %c0_i32_14 = arith.constant 0 : i32
    %20 = arith.cmpi ne, %19, %c0_i32_14 : i32
    scf.if %20 {
      %c0_15 = arith.constant 0 : index
      %c0_16 = arith.constant 0 : index
      %21 = vector.load %arg11[%c0_15, %c0_16] : memref<64x32xf32, #tpu.memory_space<vmem>>, vector<64x32xf32>
      %cst_17 = arith.constant dense<0.000000e+00> : vector<32xf32>
      %22 = vector.multi_reduction <add>, %21, %cst_17 [0] : vector<64x32xf32> to vector<32xf32>
      %23 = vector.shape_cast %22 : vector<32xf32> to vector<1x32xf32>
      %cst_18 = arith.constant 6.400000e+01 : f32
      %24 = vector.broadcast %cst_18 : f32 to vector<1x32xf32>
      %25 = arith.divf %23, %24 : vector<1x32xf32>
      %26 = vector.broadcast %25 : vector<1x32xf32> to vector<64x32xf32>
      %27 = arith.subf %21, %26 : vector<64x32xf32>
      %28 = vector.broadcast %25 : vector<1x32xf32> to vector<64x32xf32>
      %29 = arith.subf %21, %28 : vector<64x32xf32>
      %30 = arith.mulf %27, %29 : vector<64x32xf32>
      %cst_19 = arith.constant dense<0.000000e+00> : vector<32xf32>
      %31 = vector.multi_reduction <add>, %30, %cst_19 [0] : vector<64x32xf32> to vector<32xf32>
      %32 = vector.shape_cast %31 : vector<32xf32> to vector<1x32xf32>
      %cst_20 = arith.constant 6.400000e+01 : f32
      %33 = vector.broadcast %cst_20 : f32 to vector<1x32xf32>
      %34 = arith.divf %32, %33 : vector<1x32xf32>
      %35 = vector.broadcast %25 : vector<1x32xf32> to vector<64x32xf32>
      %36 = arith.subf %21, %35 : vector<64x32xf32>
      %cst_21 = arith.constant 9.99999974E-6 : f32
      %37 = vector.broadcast %cst_21 : f32 to vector<1x32xf32>
      %38 = arith.addf %34, %37 : vector<1x32xf32>
      %39 = math.rsqrt %38 : vector<1x32xf32>
      %40 = vector.broadcast %39 : vector<1x32xf32> to vector<64x32xf32>
      %41 = arith.mulf %36, %40 : vector<64x32xf32>
      %c0_22 = arith.constant 0 : index
      %c0_23 = arith.constant 0 : index
      %42 = vector.load %arg7[%c0_22, %c0_23] : memref<1x32xf32, #tpu.memory_space<vmem>>, vector<1x32xf32>
      %43 = vector.broadcast %42 : vector<1x32xf32> to vector<64x32xf32>
      %44 = arith.mulf %41, %43 : vector<64x32xf32>
      %c0_24 = arith.constant 0 : index
      %c0_25 = arith.constant 0 : index
      %45 = vector.load %arg8[%c0_24, %c0_25] : memref<1x32xf32, #tpu.memory_space<vmem>>, vector<1x32xf32>
      %46 = vector.broadcast %45 : vector<1x32xf32> to vector<64x32xf32>
      %47 = arith.addf %44, %46 : vector<64x32xf32>
      %cst_26 = arith.constant 0.000000e+00 : f32
      %48 = vector.broadcast %cst_26 : f32 to vector<64x32xf32>
      %49 = arith.maximumf %47, %48 : vector<64x32xf32>
      %50 = arith.truncf %49 : vector<64x32xf32> to vector<64x32xbf16>
      %c0_27 = arith.constant 0 : index
      %c0_28 = arith.constant 0 : index
      %51 = vector.load %arg9[%c0_27, %c0_28] : memref<64x32xbf16, #tpu.memory_space<vmem>>, vector<64x32xbf16>
      tpu.vector_store %arg9[%c0_27, %c0_28], %50 {strides = array<i32>} : memref<64x32xbf16, #tpu.memory_space<vmem>>, vector<64x32xbf16>,
    } else {
    }
    return
  }
  func.func @transform_0(%arg0: i32) -> (i32, i32) {
    %c0_i32 = arith.constant 0 : i32
    %c0_i32_0 = arith.constant 0 : i32
    %c0_i32_1 = arith.constant 0 : i32
    return %c0_i32, %c0_i32_0 : i32, i32
  }
  func.func @transform_1(%arg0: i32) -> (i32, i32) {
    %c0_i32 = arith.constant 0 : i32
    %c0_i32_0 = arith.constant 0 : i32
    return %arg0, %c0_i32 : i32, i32
  }
  func.func @transform_2(%arg0: i32) -> (i32, i32) {
    %c0_i32 = arith.constant 0 : i32
    %c0_i32_0 = arith.constant 0 : i32
    return %c0_i32, %arg0 : i32, i32
  }
  func.func @transform_3(%arg0: i32) -> (i32, i32) {
    %c0_i32 = arith.constant 0 : i32
    %c0_i32_0 = arith.constant 0 : i32
    return %arg0, %c0_i32 : i32, i32
  }
  func.func @transform_4(%arg0: i32) -> (i32, i32) {
    %c0_i32 = arith.constant 0 : i32
    %c0_i32_0 = arith.constant 0 : i32
    %c0_i32_1 = arith.constant 0 : i32
    return %c0_i32, %c0_i32_0 : i32, i32
  }
  func.func @transform_5(%arg0: i32) -> (i32, i32) {
    %c0_i32 = arith.constant 0 : i32
    %c0_i32_0 = arith.constant 0 : i32
    %c0_i32_1 = arith.constant 0 : i32
    return %c0_i32, %c0_i32_0 : i32, i32
  }
  func.func @transform_6(%arg0: i32) -> (i32, i32) {
    %c0_i32 = arith.constant 0 : i32
    %c0_i32_0 = arith.constant 0 : i32
    %c0_i32_1 = arith.constant 0 : i32
    return %c0_i32, %c0_i32_0 : i32, i32
  }
  func.func @transform_7(%arg0: i32) -> (i32, i32) {
    %c0_i32 = arith.constant 0 : i32
    %c0_i32_0 = arith.constant 0 : i32
    %c0_i32_1 = arith.constant 0 : i32
    return %c0_i32, %c0_i32_0 : i32, i32
  }
  func.func @transform_8(%arg0: i32) -> (i32, i32) {
    %c0_i32 = arith.constant 0 : i32
    %c0_i32_0 = arith.constant 0 : i32
    %c0_i32_1 = arith.constant 0 : i32
    return %c0_i32, %c0_i32_0 : i32, i32
  }
}

module attributes {stable_mosaic.version = 11 : i64} {
  func.func @_gcn_layer_kernel(%arg0: i32, %arg1: memref<64x16xbf16, #tpu.memory_space<vmem>>, %arg2: memref<256x64xi8, #tpu.memory_space<vmem>>, %arg3: memref<64x256xbf16, #tpu.memory_space<vmem>>, %arg4: memref<256x32xbf16, #tpu.memory_space<vmem>>, %arg5: memref<16x32xbf16, #tpu.memory_space<vmem>>, %arg6: memref<1x32xf32, #tpu.memory_space<vmem>>, %arg7: memref<1x32xf32, #tpu.memory_space<vmem>>, %arg8: memref<1x32xf32, #tpu.memory_space<vmem>>, %arg9: memref<64x32xbf16, #tpu.memory_space<vmem>>, %arg10: memref<64x32xbf16, #tpu.memory_space<vmem>>, %arg11: memref<64x32xf32, #tpu.memory_space<vmem>>) attributes {dimension_semantics = [#tpu.dimension_semantics<arbitrary>], iteration_bounds = array<i64: 2>, scalar_prefetch = 0 : i64, scratch_operands = 2 : i64, tpu.core_type = #tpu.core_type<tc>, window_params = [{pipeline_mode = #tpu.pipeline_mode<synchronous>, transform_indices = @transform_0, window_bounds = array<i64: 64, 16>}, {transform_indices = @transform_1, window_bounds = array<i64: 256, 64>}, {transform_indices = @transform_2, window_bounds = array<i64: 64, 256>}, {transform_indices = @transform_3, window_bounds = array<i64: 256, 32>}, {pipeline_mode = #tpu.pipeline_mode<synchronous>, transform_indices = @transform_4, window_bounds = array<i64: 16, 32>}, {pipeline_mode = #tpu.pipeline_mode<synchronous>, transform_indices = @transform_5, window_bounds = array<i64: 1, 32>}, {pipeline_mode = #tpu.pipeline_mode<synchronous>, transform_indices = @transform_6, window_bounds = array<i64: 1, 32>}, {pipeline_mode = #tpu.pipeline_mode<synchronous>, transform_indices = @transform_7, window_bounds = array<i64: 1, 32>}, {pipeline_mode = #tpu.pipeline_mode<synchronous>, transform_indices = @transform_8, window_bounds = array<i64: 64, 32>}]} {
    %c0_i32 = arith.constant 0 : i32
    %0 = arith.cmpi eq, %arg0, %c0_i32 : i32
    %1 = arith.extui %0 : i1 to i32
    %c0_i32_0 = arith.constant 0 : i32
    %2 = arith.cmpi ne, %1, %c0_i32_0 : i32
    scf.if %2 {
      %c0_15 = arith.constant 0 : index
      %c0_16 = arith.constant 0 : index
      %21 = vector.load %arg1[%c0_15, %c0_16] : memref<64x16xbf16, #tpu.memory_space<vmem>>, vector<64x16xbf16>
      %c0_17 = arith.constant 0 : index
      %c0_18 = arith.constant 0 : index
      %22 = vector.load %arg5[%c0_17, %c0_18] : memref<16x32xbf16, #tpu.memory_space<vmem>>, vector<16x32xbf16>
      %cst_19 = arith.constant dense<0.000000e+00> : vector<64x32xf32>
      %23 = tpu.matmul %21, %22, %cst_19 {dimension_numbers = #tpu.dot_dimension_numbers<[1], [0], [0], [1], [0, 0, 1, 1], [], []>} : vector<64x16xbf16>, vector<16x32xbf16>, vector<64x32xf32> -> vector<64x32xf32>
      %c0_20 = arith.constant 0 : index
      %c0_21 = arith.constant 0 : index
      %24 = vector.load %arg6[%c0_20, %c0_21] : memref<1x32xf32, #tpu.memory_space<vmem>>, vector<1x32xf32>
      %25 = vector.broadcast %24 : vector<1x32xf32> to vector<64x32xf32>
      %26 = arith.addf %23, %25 : vector<64x32xf32>
      %27 = arith.truncf %26 : vector<64x32xf32> to vector<64x32xbf16>
      %c0_22 = arith.constant 0 : index
      %c0_23 = arith.constant 0 : index
      %28 = vector.load %arg10[%c0_22, %c0_23] : memref<64x32xbf16, #tpu.memory_space<vmem>>, vector<64x32xbf16>
      tpu.vector_store %arg10[%c0_22, %c0_23], %27 {strides = array<i32>} : memref<64x32xbf16, #tpu.memory_space<vmem>>, vector<64x32xbf16>,
      %cst_24 = arith.constant 0.000000e+00 : f32
      %29 = vector.broadcast %cst_24 : f32 to vector<64x32xf32>
      %c0_25 = arith.constant 0 : index
      %c0_26 = arith.constant 0 : index
      %30 = vector.load %arg11[%c0_25, %c0_26] : memref<64x32xf32, #tpu.memory_space<vmem>>, vector<64x32xf32>
      tpu.vector_store %arg11[%c0_25, %c0_26], %29 {strides = array<i32>} : memref<64x32xf32, #tpu.memory_space<vmem>>, vector<64x32xf32>,
    } else {
    }
    %c0 = arith.constant 0 : index
    %c0_1 = arith.constant 0 : index
    %3 = vector.load %arg2[%c0, %c0_1] : memref<256x64xi8, #tpu.memory_space<vmem>>, vector<256x64xi8>
    %4 = arith.sitofp %3 : vector<256x64xi8> to vector<256x64xbf16>
    %c0_2 = arith.constant 0 : index
    %c0_3 = arith.constant 0 : index
    %5 = vector.load %arg10[%c0_2, %c0_3] : memref<64x32xbf16, #tpu.memory_space<vmem>>, vector<64x32xbf16>
    %cst = arith.constant dense<0.000000e+00> : vector<256x32xf32>
    %6 = tpu.matmul %4, %5, %cst {dimension_numbers = #tpu.dot_dimension_numbers<[1], [0], [0], [1], [0, 0, 1, 1], [], []>} : vector<256x64xbf16>, vector<64x32xbf16>, vector<256x32xf32> -> vector<256x32xf32>
    %c0_4 = arith.constant 0 : index
    %c0_5 = arith.constant 0 : index
    %7 = vector.load %arg4[%c0_4, %c0_5] : memref<256x32xbf16, #tpu.memory_space<vmem>>, vector<256x32xbf16>
    %8 = arith.extf %7 : vector<256x32xbf16> to vector<256x32xf32>
    %9 = arith.addf %6, %8 : vector<256x32xf32>
    %cst_6 = arith.constant 0.000000e+00 : f32
    %10 = vector.broadcast %cst_6 : f32 to vector<256x32xf32>
    %11 = arith.maximumf %9, %10 : vector<256x32xf32>
    %c0_7 = arith.constant 0 : index
    %c0_8 = arith.constant 0 : index
    %12 = vector.load %arg11[%c0_7, %c0_8] : memref<64x32xf32, #tpu.memory_space<vmem>>, vector<64x32xf32>
    %c0_9 = arith.constant 0 : index
    %c0_10 = arith.constant 0 : index
    %13 = vector.load %arg3[%c0_9, %c0_10] : memref<64x256xbf16, #tpu.memory_space<vmem>>, vector<64x256xbf16>
    %14 = arith.truncf %11 : vector<256x32xf32> to vector<256x32xbf16>
    %cst_11 = arith.constant dense<0.000000e+00> : vector<64x32xf32>
    %15 = tpu.matmul %13, %14, %cst_11 {dimension_numbers = #tpu.dot_dimension_numbers<[1], [0], [0], [1], [0, 0, 1, 1], [], []>} : vector<64x256xbf16>, vector<256x32xbf16>, vector<64x32xf32> -> vector<64x32xf32>
    %16 = arith.addf %12, %15 : vector<64x32xf32>
    %c0_12 = arith.constant 0 : index
    %c0_13 = arith.constant 0 : index
    %17 = vector.load %arg11[%c0_12, %c0_13] : memref<64x32xf32, #tpu.memory_space<vmem>>, vector<64x32xf32>
    tpu.vector_store %arg11[%c0_12, %c0_13], %16 {strides = array<i32>} : memref<64x32xf32, #tpu.memory_space<vmem>>, vector<64x32xf32>,
    %c1_i32 = arith.constant 1 : i32
    %18 = arith.cmpi eq, %arg0, %c1_i32 : i32
    %19 = arith.extui %18 : i1 to i32
    %c0_i32_14 = arith.constant 0 : i32
    %20 = arith.cmpi ne, %19, %c0_i32_14 : i32
    scf.if %20 {
      %c0_15 = arith.constant 0 : index
      %c0_16 = arith.constant 0 : index
      %21 = vector.load %arg11[%c0_15, %c0_16] : memref<64x32xf32, #tpu.memory_space<vmem>>, vector<64x32xf32>
      %cst_17 = arith.constant dense<0.000000e+00> : vector<32xf32>
      %22 = vector.multi_reduction <add>, %21, %cst_17 [0] : vector<64x32xf32> to vector<32xf32>
      %23 = vector.shape_cast %22 : vector<32xf32> to vector<1x32xf32>
      %cst_18 = arith.constant 6.400000e+01 : f32
      %24 = vector.broadcast %cst_18 : f32 to vector<1x32xf32>
      %25 = arith.divf %23, %24 : vector<1x32xf32>
      %26 = vector.broadcast %25 : vector<1x32xf32> to vector<64x32xf32>
      %27 = arith.subf %21, %26 : vector<64x32xf32>
      %28 = vector.broadcast %25 : vector<1x32xf32> to vector<64x32xf32>
      %29 = arith.subf %21, %28 : vector<64x32xf32>
      %30 = arith.mulf %27, %29 : vector<64x32xf32>
      %cst_19 = arith.constant dense<0.000000e+00> : vector<32xf32>
      %31 = vector.multi_reduction <add>, %30, %cst_19 [0] : vector<64x32xf32> to vector<32xf32>
      %32 = vector.shape_cast %31 : vector<32xf32> to vector<1x32xf32>
      %cst_20 = arith.constant 6.400000e+01 : f32
      %33 = vector.broadcast %cst_20 : f32 to vector<1x32xf32>
      %34 = arith.divf %32, %33 : vector<1x32xf32>
      %35 = vector.broadcast %25 : vector<1x32xf32> to vector<64x32xf32>
      %36 = arith.subf %21, %35 : vector<64x32xf32>
      %cst_21 = arith.constant 9.99999974E-6 : f32
      %37 = vector.broadcast %cst_21 : f32 to vector<1x32xf32>
      %38 = arith.addf %34, %37 : vector<1x32xf32>
      %39 = math.rsqrt %38 : vector<1x32xf32>
      %40 = vector.broadcast %39 : vector<1x32xf32> to vector<64x32xf32>
      %41 = arith.mulf %36, %40 : vector<64x32xf32>
      %c0_22 = arith.constant 0 : index
      %c0_23 = arith.constant 0 : index
      %42 = vector.load %arg7[%c0_22, %c0_23] : memref<1x32xf32, #tpu.memory_space<vmem>>, vector<1x32xf32>
      %43 = vector.broadcast %42 : vector<1x32xf32> to vector<64x32xf32>
      %44 = arith.mulf %41, %43 : vector<64x32xf32>
      %c0_24 = arith.constant 0 : index
      %c0_25 = arith.constant 0 : index
      %45 = vector.load %arg8[%c0_24, %c0_25] : memref<1x32xf32, #tpu.memory_space<vmem>>, vector<1x32xf32>
      %46 = vector.broadcast %45 : vector<1x32xf32> to vector<64x32xf32>
      %47 = arith.addf %44, %46 : vector<64x32xf32>
      %cst_26 = arith.constant 0.000000e+00 : f32
      %48 = vector.broadcast %cst_26 : f32 to vector<64x32xf32>
      %49 = arith.maximumf %47, %48 : vector<64x32xf32>
      %50 = arith.truncf %49 : vector<64x32xf32> to vector<64x32xbf16>
      %c0_27 = arith.constant 0 : index
      %c0_28 = arith.constant 0 : index
      %51 = vector.load %arg9[%c0_27, %c0_28] : memref<64x32xbf16, #tpu.memory_space<vmem>>, vector<64x32xbf16>
      tpu.vector_store %arg9[%c0_27, %c0_28], %50 {strides = array<i32>} : memref<64x32xbf16, #tpu.memory_space<vmem>>, vector<64x32xbf16>,
    } else {
    }
    return
  }
  func.func @transform_0(%arg0: i32) -> (i32, i32) {
    %c0_i32 = arith.constant 0 : i32
    %c0_i32_0 = arith.constant 0 : i32
    %c0_i32_1 = arith.constant 0 : i32
    return %c0_i32, %c0_i32_0 : i32, i32
  }
  func.func @transform_1(%arg0: i32) -> (i32, i32) {
    %c0_i32 = arith.constant 0 : i32
    %c0_i32_0 = arith.constant 0 : i32
    return %arg0, %c0_i32 : i32, i32
  }
  func.func @transform_2(%arg0: i32) -> (i32, i32) {
    %c0_i32 = arith.constant 0 : i32
    %c0_i32_0 = arith.constant 0 : i32
    return %c0_i32, %arg0 : i32, i32
  }
  func.func @transform_3(%arg0: i32) -> (i32, i32) {
    %c0_i32 = arith.constant 0 : i32
    %c0_i32_0 = arith.constant 0 : i32
    return %arg0, %c0_i32 : i32, i32
  }
  func.func @transform_4(%arg0: i32) -> (i32, i32) {
    %c0_i32 = arith.constant 0 : i32
    %c0_i32_0 = arith.constant 0 : i32
    %c0_i32_1 = arith.constant 0 : i32
    return %c0_i32, %c0_i32_0 : i32, i32
  }
  func.func @transform_5(%arg0: i32) -> (i32, i32) {
    %c0_i32 = arith.constant 0 : i32
    %c0_i32_0 = arith.constant 0 : i32
    %c0_i32_1 = arith.constant 0 : i32
    return %c0_i32, %c0_i32_0 : i32, i32
  }
  func.func @transform_6(%arg0: i32) -> (i32, i32) {
    %c0_i32 = arith.constant 0 : i32
    %c0_i32_0 = arith.constant 0 : i32
    %c0_i32_1 = arith.constant 0 : i32
    return %c0_i32, %c0_i32_0 : i32, i32
  }
  func.func @transform_7(%arg0: i32) -> (i32, i32) {
    %c0_i32 = arith.constant 0 : i32
    %c0_i32_0 = arith.constant 0 : i32
    %c0_i32_1 = arith.constant 0 : i32
    return %c0_i32, %c0_i32_0 : i32, i32
  }
  func.func @transform_8(%arg0: i32) -> (i32, i32) {
    %c0_i32 = arith.constant 0 : i32
    %c0_i32_0 = arith.constant 0 : i32
    %c0_i32_1 = arith.constant 0 : i32
    return %c0_i32, %c0_i32_0 : i32, i32
  }
}

</mosaic_0001>

<llo_original>
// kernel: base_gcn_forward.3
$region0: #{base_gcn_forward.3}
  #allocation0 [shape = 'u32[]', space=smem, size = 0x4, offset = 0x4, fixed_abs, tag = 'smem constant byte address 0x4 - core index']
  #allocation1 [shape = 'u32[72,128]{1,0:T(1,128)}', space=vmem, size = 0x9000, scoped, tag = 'internal scratch']
  #allocation2 [shape = 'bf16[64,32]{1,0:T(8,128)(2,1)}', space=vmem, size = 0x4000, scoped, tag = 'scratch operand']
  #allocation3 [shape = 'f32[64,32]{1,0:T(8,128)}', space=vmem, size = 0x8000, scoped, tag = 'scratch operand']
  %s0 = inlined_call_operand.vmem [shape: bf16[64,16], index: 0, kind: input, shape index: {}]
  %s1 = inlined_call_operand.vmem [shape: s8[512,64], index: 1, kind: input, shape index: {}]
  %s2 = inlined_call_operand.vmem [shape: bf16[64,512], index: 2, kind: input, shape index: {}]
  %s3 = inlined_call_operand.vmem [shape: bf16[512,32], index: 3, kind: input, shape index: {}]
  %s4 = inlined_call_operand.vmem [shape: bf16[16,32], index: 4, kind: input, shape index: {}]
  %s5 = inlined_call_operand.vmem [shape: f32[1,32], index: 5, kind: input, shape index: {}, may-alias: {5,7}]
  %s6 = inlined_call_operand.vmem [shape: f32[1,32], index: 6, kind: input, shape index: {}]
  %s7 = inlined_call_operand.vmem [shape: f32[1,32], index: 7, kind: input, shape index: {}, may-alias: {5,7}]
  %s8 = inlined_call_operand.vmem [shape: bf16[64,32], index: 8, kind: output, shape index: {}]
  %s9 = sld [smem:[#allocation0]]
  $region111: #{base_gcn_forward.3} parent=0
    _
  %s11 = ssub.s32 1, %s9
  %s12 = scalar_select 0, %s11, %s9
  $region1: #{base_gcn_forward.3} parent=0
    #allocation4 [shape = 'u8[65536]{0}', space=vmem, size = 0x10000, scoped, tag = 'input window, operand 2']
    loop: start=0, step=1, limit=4
    $region2: #{base_gcn_forward.3} parent=1 // loop_pre_header
      _
    $region3: #{base_gcn_forward.3} parent=1 // loop_header
      %s14 = sphi 0, %s18
      %p15 = scmp.ge.s32.totalorder %s14, 4
      %s22 = sphi 0, %s22
      %s24 = sphi 0, %s22
      %s25 = sphi 0, %s24
      %s39 = sphi 0, %s25
      %s45 = sphi 0, %s47
      %s48 = sphi 0, %s45
      %s49 = sphi 0, %s48
      %s65 = sphi 0, %s49
      %s71 = sphi 0, %s73
      %s74 = sphi 0, %s71
      %s75 = sphi 0, %s74
      %s91 = sphi 0, %s75
      %s97 = sphi 0, %s99
      %s100 = sphi 0, %s97
      %s101 = sphi 0, %s100
      %s117 = sphi 0, %s101
      %s121 = sphi 0, %s121
      %s123 = sphi 0, %s121
      %s124 = sphi 0, %s123
      %s138 = sphi 0, %s124
      %s142 = sphi 0, %s142
      %s144 = sphi 0, %s142
      %s145 = sphi 0, %s144
      %s159 = sphi 0, %s145
      %s163 = sphi 0, %s163
      %s165 = sphi 0, %s163
      %s166 = sphi 0, %s165
      %s180 = sphi 0, %s166
      %s184 = sphi 0, %s184
      %s186 = sphi 0, %s184
      %s187 = sphi 0, %s186
      %s201 = sphi 0, %s187
      %s205 = sphi 0, %s205
      %s207 = sphi 0, %s205
      %s208 = sphi 0, %s207
      %s222 = sphi 0, %s208
    $region4: #{base_gcn_forward.3} parent=1 // loop_header_branch
      %17 = sbr.rel (%p15) target = $region8
    $region5: #{base_gcn_forward.3} parent=1 // loop_body
      %s19 = ssub.s32 %s14, 1
      %s20 = ssub.s32 %s14, 2
      %s21 = sadd.s32 %s14, 1
      %s23 = sadd.s32 %s22, 1
      %p26 = scmp.eq.s32.totalorder %s14, 1
      %p27 = scmp.ne.s32.totalorder %s22, %s24
      %p28 = scmp.eq.s32.totalorder %s14, 0
      %p29 = por %p27, %p28
      %p30 = scmp.ne.s32.totalorder %s22, %s24
      %p31 = scmp.eq.s32.totalorder %s19, 1
      %p32 = por %p30, %p31
      %p33 = scmp.ne.s32.totalorder %s24, %s25
      %p34 = scmp.eq.s32.totalorder %s19, 0
      %p35 = por %p33, %p34
      %p36 = scmp.ne.s32.totalorder %s24, %s25
      %p37 = scmp.eq.s32.totalorder %s20, 1
      %p38 = por %p36, %p37
      %p40 = scmp.ne.s32.totalorder %s25, %s39
      %p41 = scmp.eq.s32.totalorder %s20, 0
      %p42 = por %p40, %p41
      %s43 = ssub.s32 %s14, %s21
      %p44 = scmp.eq.s32.totalorder %s43, 0
      %s46 = sadd.s32 %s45, 1
      %s47 = scalar_select %p44, %s45, %s46
      %p50 = pneg %p44
      %p51 = scmp.eq.s32.totalorder %s14, 1
      %p52 = por %p50, %p51
      %p53 = scmp.ne.s32.totalorder %s45, %s48
      %p54 = scmp.eq.s32.totalorder %s14, 0
      %p55 = por %p53, %p54
      %p56 = scmp.ne.s32.totalorder %s45, %s48
      %p57 = scmp.eq.s32.totalorder %s19, 1
      %p58 = por %p56, %p57
      %p59 = scmp.ne.s32.totalorder %s48, %s49
      %p60 = scmp.eq.s32.totalorder %s19, 0
      %p61 = por %p59, %p60
      %p62 = scmp.ne.s32.totalorder %s48, %s49
      %p63 = scmp.eq.s32.totalorder %s20, 1
      %p64 = por %p62, %p63
      %p66 = scmp.ne.s32.totalorder %s49, %s65
      %p67 = scmp.eq.s32.totalorder %s20, 0
      %p68 = por %p66, %p67
      %s69 = ssub.s32 %s14, %s21
      %p70 = scmp.eq.s32.totalorder %s69, 0
      %s72 = sadd.s32 %s71, 1
      %s73 = scalar_select %p70, %s71, %s72
      %p76 = pneg %p70
      %p77 = scmp.eq.s32.totalorder %s14, 1
      %p78 = por %p76, %p77
      %p79 = scmp.ne.s32.totalorder %s71, %s74
      %p80 = scmp.eq.s32.totalorder %s14, 0
      %p81 = por %p79, %p80
      %p82 = scmp.ne.s32.totalorder %s71, %s74
      %p83 = scmp.eq.s32.totalorder %s19, 1
      %p84 = por %p82, %p83
      %p85 = scmp.ne.s32.totalorder %s74, %s75
      %p86 = scmp.eq.s32.totalorder %s19, 0
      %p87 = por %p85, %p86
      %p88 = scmp.ne.s32.totalorder %s74, %s75
      %p89 = scmp.eq.s32.totalorder %s20, 1
      %p90 = por %p88, %p89
      %p92 = scmp.ne.s32.totalorder %s75, %s91
      %p93 = scmp.eq.s32.totalorder %s20, 0
      %p94 = por %p92, %p93
      %s95 = ssub.s32 %s14, %s21
      %p96 = scmp.eq.s32.totalorder %s95, 0
      %s98 = sadd.s32 %s97, 1
      %s99 = scalar_select %p96, %s97, %s98
      %p102 = pneg %p96
      %p103 = scmp.eq.s32.totalorder %s14, 1
      %p104 = por %p102, %p103
      %p105 = scmp.ne.s32.totalorder %s97, %s100
      %p106 = scmp.eq.s32.totalorder %s14, 0
      %p107 = por %p105, %p106
      %p108 = scmp.ne.s32.totalorder %s97, %s100
      %p109 = scmp.eq.s32.totalorder %s19, 1
      %p110 = por %p108, %p109
      %p111 = scmp.ne.s32.totalorder %s100, %s101
      %p112 = scmp.eq.s32.totalorder %s19, 0
      %p113 = por %p111, %p112
      %p114 = scmp.ne.s32.totalorder %s100, %s101
      %p115 = scmp.eq.s32.totalorder %s20, 1
      %p116 = por %p114, %p115
      %p118 = scmp.ne.s32.totalorder %s101, %s117
      %p119 = scmp.eq.s32.totalorder %s20, 0
      %p120 = por %p118, %p119
      %s122 = sadd.s32 %s121, 1
      %p125 = scmp.eq.s32.totalorder %s14, 1
      %p126 = scmp.ne.s32.totalorder %s121, %s123
      %p127 = scmp.eq.s32.totalorder %s14, 0
      %p128 = por %p126, %p127
      %p129 = scmp.ne.s32.totalorder %s121, %s123
      %p130 = scmp.eq.s32.totalorder %s19, 1
      %p131 = por %p129, %p130
      %p132 = scmp.ne.s32.totalorder %s123, %s124
      %p133 = scmp.eq.s32.totalorder %s19, 0
      %p134 = por %p132, %p133
      %p135 = scmp.ne.s32.totalorder %s123, %s124
      %p136 = scmp.eq.s32.totalorder %s20, 1
      %p137 = por %p135, %p136
      %p139 = scmp.ne.s32.totalorder %s124, %s138
      %p140 = scmp.eq.s32.totalorder %s20, 0
      %p141 = por %p139, %p140
      %s143 = sadd.s32 %s142, 1
      %p146 = scmp.eq.s32.totalorder %s14, 1
      %p147 = scmp.ne.s32.totalorder %s142, %s144
      %p148 = scmp.eq.s32.totalorder %s14, 0
      %p149 = por %p147, %p148
      %p150 = scmp.ne.s32.totalorder %s142, %s144
      %p151 = scmp.eq.s32.totalorder %s19, 1
      %p152 = por %p150, %p151
      %p153 = scmp.ne.s32.totalorder %s144, %s145
      %p154 = scmp.eq.s32.totalorder %s19, 0
      %p155 = por %p153, %p154
      %p156 = scmp.ne.s32.totalorder %s144, %s145
      %p157 = scmp.eq.s32.totalorder %s20, 1
      %p158 = por %p156, %p157
      %p160 = scmp.ne.s32.totalorder %s145, %s159
      %p161 = scmp.eq.s32.totalorder %s20, 0
      %p162 = por %p160, %p161
      %s164 = sadd.s32 %s163, 1
      %p167 = scmp.eq.s32.totalorder %s14, 1
      %p168 = scmp.ne.s32.totalorder %s163, %s165
      %p169 = scmp.eq.s32.totalorder %s14, 0
      %p170 = por %p168, %p169
      %p171 = scmp.ne.s32.totalorder %s163, %s165
      %p172 = scmp.eq.s32.totalorder %s19, 1
      %p173 = por %p171, %p172
      %p174 = scmp.ne.s32.totalorder %s165, %s166
      %p175 = scmp.eq.s32.totalorder %s19, 0
      %p176 = por %p174, %p175
      %p177 = scmp.ne.s32.totalorder %s165, %s166
      %p178 = scmp.eq.s32.totalorder %s20, 1
      %p179 = por %p177, %p178
      %p181 = scmp.ne.s32.totalorder %s166, %s180
      %p182 = scmp.eq.s32.totalorder %s20, 0
      %p183 = por %p181, %p182
      %s185 = sadd.s32 %s184, 1
      %p188 = scmp.eq.s32.totalorder %s14, 1
      %p189 = scmp.ne.s32.totalorder %s184, %s186
      %p190 = scmp.eq.s32.totalorder %s14, 0
      %p191 = por %p189, %p190
      %p192 = scmp.ne.s32.totalorder %s184, %s186
      %p193 = scmp.eq.s32.totalorder %s19, 1
      %p194 = por %p192, %p193
      %p195 = scmp.ne.s32.totalorder %s186, %s187
      %p196 = scmp.eq.s32.totalorder %s19, 0
      %p197 = por %p195, %p196
      %p198 = scmp.ne.s32.totalorder %s186, %s187
      %p199 = scmp.eq.s32.totalorder %s20, 1
      %p200 = por %p198, %p199
      %p202 = scmp.ne.s32.totalorder %s187, %s201
      %p203 = scmp.eq.s32.totalorder %s20, 0
      %p204 = por %p202, %p203
      %s206 = sadd.s32 %s205, 1
      %p209 = scmp.eq.s32.totalorder %s14, 1
      %p210 = scmp.ne.s32.totalorder %s205, %s207
      %p211 = scmp.eq.s32.totalorder %s14, 0
      %p212 = por %p210, %p211
      %p213 = scmp.ne.s32.totalorder %s205, %s207
      %p214 = scmp.eq.s32.totalorder %s19, 1
      %p215 = por %p213, %p214
      %p216 = scmp.ne.s32.totalorder %s207, %s208
      %p217 = scmp.eq.s32.totalorder %s19, 0
      %p218 = por %p216, %p217
      %p219 = scmp.ne.s32.totalorder %s207, %s208
      %p220 = scmp.eq.s32.totalorder %s20, 1
      %p221 = por %p219, %p220
      %p223 = scmp.ne.s32.totalorder %s208, %s222
      %p224 = scmp.eq.s32.totalorder %s20, 0
      %p225 = por %p223, %p224
      %p226 = scmp.le.s32.totalorder 1, %s14
      %p227 = scmp.lt.s32.totalorder %s14, 3
      %p228 = pnand %p226, %p227
      %p229 = pneg %p228
      // Predicated region
      $region9: #{base_gcn_forward.3} parent=5 // pred_check
        _
      $region10: #{base_gcn_forward.3} parent=5 // pred_check_branch
        %231 = sbr.rel (%p228) target = $region12
      $region11: #{base_gcn_forward.3} parent=5 // pred_region
        %s232 = ssub.s32 %s14, 1
        // Predicated region
        $region13: #{base_gcn_forward.3} parent=11 // pred_check
          %p233 = pneg %p35
        $region14: #{base_gcn_forward.3} parent=11 // pred_check_branch
          %235 = sbr.rel (%p233) target = $region16
        $region15: #{base_gcn_forward.3} parent=11 // pred_region
          _
        $region16: #{base_gcn_forward.3} parent=11 // pred_fallthru
          _
        // Predicated region
        $region17: #{base_gcn_forward.3} parent=11 // pred_check
          %p236 = pneg %p134
        $region18: #{base_gcn_forward.3} parent=11 // pred_check_branch
          %238 = sbr.rel (%p236) target = $region20
        $region19: #{base_gcn_forward.3} parent=11 // pred_region
          _
        $region20: #{base_gcn_forward.3} parent=11 // pred_fallthru
          _
        // Predicated region
        $region21: #{base_gcn_forward.3} parent=11 // pred_check
          %p239 = pneg %p155
        $region22: #{base_gcn_forward.3} parent=11 // pred_check_branch
          %241 = sbr.rel (%p239) target = $region24
        $region23: #{base_gcn_forward.3} parent=11 // pred_region
          _
        $region24: #{base_gcn_forward.3} parent=11 // pred_fallthru
          _
        // Predicated region
        $region25: #{base_gcn_forward.3} parent=11 // pred_check
          %p242 = pneg %p176
        $region26: #{base_gcn_forward.3} parent=11 // pred_check_branch
          %244 = sbr.rel (%p242) target = $region28
        $region27: #{base_gcn_forward.3} parent=11 // pred_region
          _
        $region28: #{base_gcn_forward.3} parent=11 // pred_fallthru
          _
        // Predicated region
        $region29: #{base_gcn_forward.3} parent=11 // pred_check
          %p245 = pneg %p197
        $region30: #{base_gcn_forward.3} parent=11 // pred_check_branch
          %247 = sbr.rel (%p245) target = $region32
        $region31: #{base_gcn_forward.3} parent=11 // pred_region
          _
        $region32: #{base_gcn_forward.3} parent=11 // pred_fallthru
          _
      $region12: #{base_gcn_forward.3} parent=5 // pred_fallthru
        _
      %p248 = scmp.lt.s32.totalorder %s14, 2
      // Predicated region
      $region33: #{base_gcn_forward.3} parent=5 // pred_check
        %p249 = pneg %p248
      $region34: #{base_gcn_forward.3} parent=5 // pred_check_branch
        %251 = sbr.rel (%p249) target = $region36
      $region35: #{base_gcn_forward.3} parent=5 // pred_region
        // Predicated region
        $region37: #{base_gcn_forward.3} parent=35 // pred_check
          %p252 = pneg %p55
        $region38: #{base_gcn_forward.3} parent=35 // pred_check_branch
          %254 = sbr.rel (%p252) target = $region40
        $region39: #{base_gcn_forward.3} parent=35 // pred_region
          %s255 = smul.u32 8, %s14
          %p256 = scmp.lt.s32.totalorder %s255, 15
          %s257 = scalar_select %p256, %s255, 15
          %s258 = smul.addr %s257, 8
          %s259 = scalar_lea.vmem %s1, %s258
          %s260 = smul.u32 8, %s14
        $region40: #{base_gcn_forward.3} parent=35 // pred_fallthru
          _
        // Predicated region
        $region41: #{base_gcn_forward.3} parent=35 // pred_check
          %p261 = pneg %p81
        $region42: #{base_gcn_forward.3} parent=35 // pred_check_branch
          %263 = sbr.rel (%p261) target = $region44
        $region43: #{base_gcn_forward.3} parent=35 // pred_region
          %s264 = sand.u32 %s71, 1
          %s265 = sand.u32 %s71, 1
          %s266 = smul.addr %s265, 64
          %s267 = scalar_lea.vmem [#allocation4], %s266
          %s268 = smul.u32 2, %s14
          %s269 = smul.addr %s268, 4
          %s270 = scalar_lea.vmem %s2, %s269
          // Predicated region
          $region45: #{base_gcn_forward.3} parent=43 // pred_check
            _
          $region46: #{base_gcn_forward.3} parent=43 // pred_check_branch
            %272 = sbr.rel (0) target = $region48
          $region47: #{base_gcn_forward.3} parent=43 // pred_region
            // Predicated region
            $region49: #{base_gcn_forward.3} parent=47 // pred_check
              _
            $region50: #{base_gcn_forward.3} parent=47 // pred_check_branch
              %274 = sbr.rel (0) target = $region52
            $region51: #{base_gcn_forward.3} parent=47 // pred_region
              // Predicated region
              $region64: #{base_gcn_forward.3} parent=51 // pred_check
                _
              $region65: #{base_gcn_forward.3} parent=51 // pred_check_branch
                %304 = sbr.rel (0) target = $region67
              $region66: #{base_gcn_forward.3} parent=51 // pred_region
                loop: start=0, step=1, limit=1
                $region68: #{base_gcn_forward.3} parent=66 // loop_pre_header
                  _
                $region69: #{base_gcn_forward.3} parent=66 // loop_header
                  %s306 = sphi 0, %s310
                  %p307 = scmp.ge.s32.totalorder %s306, 1
                  %s311 = sphi %s270, %s270
                  %s312 = sphi %s267, %s267
                $region70: #{base_gcn_forward.3} parent=66 // loop_header_branch
                  %309 = sbr.rel (%p307) target = $region74
                $region71: #{base_gcn_forward.3} parent=66 // loop_body
                  %v313 = vld [vmem:[%s311] sm:$0xff]
                  %314 = vst [vmem:[%s312] sm:$0xff] %v313
                  %v315 = vld [vmem:[%s311 + $0x10] sm:$0xff]
                  %316 = vst [vmem:[%s312 + $0x8] sm:$0xff] %v315
                  %v317 = vld [vmem:[%s311 + $0x20] sm:$0xff]
                  %318 = vst [vmem:[%s312 + $0x10] sm:$0xff] %v317
                  %v319 = vld [vmem:[%s311 + $0x30] sm:$0xff]
                  %320 = vst [vmem:[%s312 + $0x18] sm:$0xff] %v319
                  %v321 = vld [vmem:[%s311 + $0x40] sm:$0xff]
                  %322 = vst [vmem:[%s312 + $0x20] sm:$0xff] %v321
                  %v323 = vld [vmem:[%s311 + $0x50] sm:$0xff]
                  %324 = vst [vmem:[%s312 + $0x28] sm:$0xff] %v323
                  %v325 = vld [vmem:[%s311 + $0x60] sm:$0xff]
                  %326 = vst [vmem:[%s312 + $0x30] sm:$0xff] %v325
                  %v327 = vld [vmem:[%s311 + $0x70] sm:$0xff]
                  %328 = vst [vmem:[%s312 + $0x38] sm:$0xff] %v327
                $region72: #{base_gcn_forward.3} parent=66 // loop_footer
                  %s310 = sadd.s32 1, %s306
                $region73: #{base_gcn_forward.3} parent=66 // loop_footer_branch
                  %305 = sbr.rel target = $region69
                $region74: #{base_gcn_forward.3} parent=66 // loop_exit
                  _
              $region67: #{base_gcn_forward.3} parent=51 // pred_fallthru
                _
              // Predicated region
              $region75: #{base_gcn_forward.3} parent=51 // pred_check
                _
              $region76: #{base_gcn_forward.3} parent=51 // pred_check_branch
                %330 = sbr.rel target = $region78
              $region77: #{base_gcn_forward.3} parent=51 // pred_region
                _
              $region78: #{base_gcn_forward.3} parent=51 // pred_fallthru
                _
            $region52: #{base_gcn_forward.3} parent=47 // pred_fallthru
              _
            // Predicated region
            $region53: #{base_gcn_forward.3} parent=47 // pred_check
              _
            $region54: #{base_gcn_forward.3} parent=47 // pred_check_branch
              %276 = sbr.rel target = $region56
            $region55: #{base_gcn_forward.3} parent=47 // pred_region
              %s278 = ssub.s32 256, 1
              loop: start=0, step=1, limit=1
              $region57: #{base_gcn_forward.3} parent=55 // loop_pre_header
                _
              $region58: #{base_gcn_forward.3} parent=55 // loop_header
                %s280 = sphi 0, %s284
                %p281 = scmp.ge.s32.totalorder %s280, 1
                %s285 = sphi %s270, %s270
                %s286 = sphi %s267, %s267
              $region59: #{base_gcn_forward.3} parent=55 // loop_header_branch
                %283 = sbr.rel (%p281) target = $region63
              $region60: #{base_gcn_forward.3} parent=55 // loop_body
                %v287 = vld [vmem:[%s285] sm:%s278]
                %288 = vst [vmem:[%s286] sm:%s278] %v287
                %v289 = vld [vmem:[%s285 + $0x10] sm:%s278]
                %290 = vst [vmem:[%s286 + $0x8] sm:%s278] %v289
                %v291 = vld [vmem:[%s285 + $0x20] sm:%s278]
                %292 = vst [vmem:[%s286 + $0x10] sm:%s278] %v291
                %v293 = vld [vmem:[%s285 + $0x30] sm:%s278]
                %294 = vst [vmem:[%s286 + $0x18] sm:%s278] %v293
                %v295 = vld [vmem:[%s285 + $0x40] sm:%s278]
                %296 = vst [vmem:[%s286 + $0x20] sm:%s278] %v295
                %v297 = vld [vmem:[%s285 + $0x50] sm:%s278]
                %298 = vst [vmem:[%s286 + $0x28] sm:%s278] %v297
                %v299 = vld [vmem:[%s285 + $0x60] sm:%s278]
                %300 = vst [vmem:[%s286 + $0x30] sm:%s278] %v299
                %v301 = vld [vmem:[%s285 + $0x70] sm:%s278]
                %302 = vst [vmem:[%s286 + $0x38] sm:%s278] %v301
              $region61: #{base_gcn_forward.3} parent=55 // loop_footer
                %s284 = sadd.s32 1, %s280
              $region62: #{base_gcn_forward.3} parent=55 // loop_footer_branch
                %279 = sbr.rel target = $region58
              $region63: #{base_gcn_forward.3} parent=55 // loop_exit
                _
            $region56: #{base_gcn_forward.3} parent=47 // pred_fallthru
              _
          $region48: #{base_gcn_forward.3} parent=43 // pred_fallthru
            _
          %331 = vnop
        $region44: #{base_gcn_forward.3} parent=35 // pred_fallthru
          _
        // Predicated region
        $region79: #{base_gcn_forward.3} parent=35 // pred_check
          %p332 = pneg %p107
        $region80: #{base_gcn_forward.3} parent=35 // pred_check_branch
          %334 = sbr.rel (%p332) target = $region82
        $region81: #{base_gcn_forward.3} parent=35 // pred_region
          %s335 = smul.u32 32, %s14
          %p336 = scmp.lt.s32.totalorder %s335, 63
          %s337 = scalar_select %p336, %s335, 63
          %s338 = smul.addr %s337, 4
          %s339 = scalar_lea.vmem %s3, %s338
          %s340 = smul.u32 32, %s14
        $region82: #{base_gcn_forward.3} parent=35 // pred_fallthru
          _
      $region36: #{base_gcn_forward.3} parent=5 // pred_fallthru
        _
      %p341 = scmp.le.s32.totalorder 1, %s14
      %p342 = scmp.lt.s32.totalorder %s14, 3
      %p343 = pnand %p341, %p342
      %p344 = pneg %p343
      // Predicated region
      $region83: #{base_gcn_forward.3} parent=5 // pred_check
        _
      $region84: #{base_gcn_forward.3} parent=5 // pred_check_branch
        %346 = sbr.rel (%p343) target = $region86
      $region85: #{base_gcn_forward.3} parent=5 // pred_region
        %s347 = ssub.s32 %s14, 1
        %s348 = sand.u32 %s74, 1
        %s349 = sand.u32 %s74, 1
        %s350 = smul.addr %s349, 64
        %s351 = scalar_lea.vmem [#allocation4], %s350
        // Predicated region
        $region87: #{base_gcn_forward.3} parent=85 // pred_check
          %p352 = pneg %p87
        $region88: #{base_gcn_forward.3} parent=85 // pred_check_branch
          %354 = sbr.rel (%p352) target = $region90
        $region89: #{base_gcn_forward.3} parent=85 // pred_region
          _
        $region90: #{base_gcn_forward.3} parent=85 // pred_fallthru
          _
        %p355 = pneg %p35
        %p356 = pneg %p32
        %s357 = smul.u32 8, %s19
        %p358 = scmp.lt.s32.totalorder %s357, 15
        %s359 = scalar_select %p358, %s357, 15
        %s360 = smul.addr %s359, 8
        %s361 = scalar_lea.vmem %s1, %s360
        %p362 = pneg %p61
        %p363 = pneg %p58
        %s364 = sand.u32 %s74, 1
        %s365 = sand.u32 %s74, 1
        %s366 = smul.addr %s365, 64
        %s367 = scalar_lea.vmem [#allocation4], %s366
        %p368 = pneg %p87
        %p369 = pneg %p84
        %s370 = smul.u32 32, %s19
        %p371 = scmp.lt.s32.totalorder %s370, 63
        %s372 = scalar_select %p371, %s370, 63
        %s373 = smul.addr %s372, 4
        %s374 = scalar_lea.vmem %s3, %s373
        %p375 = pneg %p113
        %p376 = pneg %p110
        %p377 = pneg %p134
        %p378 = pneg %p131
        %p379 = pneg %p155
        %p380 = pneg %p152
        %p381 = pneg %p176
        %p382 = pneg %p173
        %p383 = pneg %p197
        %p384 = pneg %p194
        %p385 = pneg %p218
        %p386 = pneg %p215
        %s387 = smul.u32 8, %s19
        %p388 = scmp.lt.s32.totalorder %s387, 15
        %s389 = scalar_select %p388, %s387, 15
        %s390 = smul.addr %s389, 8
        %s391 = scalar_lea.vmem %s1, %s390
        %s392 = smul.u32 8, %s19
        %s393 = smul.u32 2, %s19
        %s394 = smul.u32 32, %s19
        %p395 = scmp.lt.s32.totalorder %s394, 63
        %s396 = scalar_select %p395, %s394, 63
        %s397 = smul.addr %s396, 4
        %s398 = scalar_lea.vmem %s3, %s397
        %s399 = smul.u32 32, %s19
        %p401 = scmp.eq.s32.totalorder %s19, 0
        // Predicated region
        $region91: #{base_gcn_forward.3} parent=85 // pred_check
          %p402 = pneg %p401
        $region92: #{base_gcn_forward.3} parent=85 // pred_check_branch
          %404 = sbr.rel (%p402) target = $region94
        $region93: #{base_gcn_forward.3} parent=85 // pred_region
          %v405 = vld [vmem:[%s0] sm:$0xf]
          %v406 = vld [vmem:[%s0 + $0x4] sm:$0xf]
          %v407 = vld [vmem:[%s0 + $0x8] sm:$0xf]
          %v408 = vld [vmem:[%s0 + $0xc] sm:$0xf]
          %v409 = vld [vmem:[%s0 + $0x10] sm:$0xf]
          %v410 = vld [vmem:[%s0 + $0x14] sm:$0xf]
          %v411 = vld [vmem:[%s0 + $0x18] sm:$0xf]
          %v412 = vld [vmem:[%s0 + $0x1c] sm:$0xf]
          %v413 = vld [vmem:[%s4] sm:$0xf]
          %v414 = vld [vmem:[%s4 + $0x4] sm:$0xf]
          %v415 = vld [vmem:[%s5] sm:$0x1]
          %v417 = vperm.slane %v415, 0
          %v427 = vunpack.c.l.b16 %v405
          %v428 = vunpack.c.l.b16 %v406
          %v429 = vunpack.c.l.b16 %v407
          %v430 = vunpack.c.l.b16 %v408
          %v431 = vunpack.c.l.b16 %v409
          %v432 = vunpack.c.l.b16 %v410
          %v433 = vunpack.c.l.b16 %v411
          %v434 = vunpack.c.l.b16 %v412
          %v435 = vpack.c.b16 %v428, %v427
          %v436 = vpack.c.b16 %v430, %v429
          %v437 = vpack.c.b16 %v432, %v431
          %v438 = vpack.c.b16 %v434, %v433
          %v441 = vunpack.c.l.b16 %v413
          %v442 = vunpack.c.l.b16 %v414
          %v443 = vpack.c.b16 %v442, %v441
          %vm445 = vcmask 130048
          %v447 = vsel %vm445, %v435, 0
          %v450 = vsel %vm445, %v436, 0
          %v453 = vsel %vm445, %v437, 0
          %v456 = vsel %vm445, %v438, 0
          %458 = vmatpush.bf16.msra.mxu0 0
          %459 = vmatpush.bf16.msra.mxu0 0
          %460 = vmatpush.bf16.msra.mxu0 0
          %461 = vmatpush.bf16.msra.mxu0 0
          %462 = vmatpush.bf16.msra.mxu0 0
          %463 = vmatpush.bf16.msra.mxu0 0
          %464 = vmatpush.bf16.msra.mxu0 0
          %465 = vmatpush.bf16.msra.mxu0 %v443
          %466 = vmatmul.bf16.gmra.mxu0 %v447
          %v467 = vpop.f32.mrf.mxu0
          %v468 = vadd.f32 %v417, %v467
          %v469 = vpop.f32.mrf.mxu0
          %v470 = vadd.f32 %v417, %v469
          %471 = vmatmul.bf16.gmra.mxu0 %v450
          %v472 = vpop.f32.mrf.mxu0
          %v473 = vadd.f32 %v417, %v472
          %v474 = vpop.f32.mrf.mxu0
          %v475 = vadd.f32 %v417, %v474
          %476 = vmatmul.bf16.gmra.mxu0 %v453
          %v477 = vpop.f32.mrf.mxu0
          %v478 = vadd.f32 %v417, %v477
          %v479 = vpop.f32.mrf.mxu0
          %v480 = vadd.f32 %v417, %v479
          %481 = vmatmul.bf16.gmra.mxu0 %v456
          %v482 = vpop.f32.mrf.mxu0
          %v483 = vadd.f32 %v417, %v482
          %v484 = vpop.f32.mrf.mxu0
          %v485 = vadd.f32 %v417, %v484
          %486 = vdwg.mxu0
          %v487 = vpack.c.bf16 %v468, %v468
          %v488 = vpack.c.bf16 %v470, %v470
          %v489 = vpack.c.bf16 %v473, %v473
          %v490 = vpack.c.bf16 %v475, %v475
          %v491 = vpack.c.bf16 %v478, %v478
          %v492 = vpack.c.bf16 %v480, %v480
          %v493 = vpack.c.bf16 %v483, %v483
          %v494 = vpack.c.bf16 %v485, %v485
          %vm495 = vcmask 257024
          %496 = vst.msk [vmem:[#allocation2] sm:$0xf] %vm495, %v487
          %497 = vst.msk [vmem:[#allocation2 + $0x4] sm:$0xf] %vm495, %v488
          %498 = vst.msk [vmem:[#allocation2 + $0x8] sm:$0xf] %vm495, %v489
          %499 = vst.msk [vmem:[#allocation2 + $0xc] sm:$0xf] %vm495, %v490
          %500 = vst.msk [vmem:[#allocation2 + $0x10] sm:$0xf] %vm495, %v491
          %501 = vst.msk [vmem:[#allocation2 + $0x14] sm:$0xf] %vm495, %v492
          %502 = vst.msk [vmem:[#allocation2 + $0x18] sm:$0xf] %vm495, %v493
          %503 = vst.msk [vmem:[#allocation2 + $0x1c] sm:$0xf] %vm495, %v494
          %vm504 = vcmask 261120
          %505 = vst.msk [vmem:[#allocation3] sm:$0xff] %vm504, 0.0
          %506 = vst.msk [vmem:[#allocation3 + $0x8] sm:$0xff] %vm504, 0.0
          %507 = vst.msk [vmem:[#allocation3 + $0x10] sm:$0xff] %vm504, 0.0
          %508 = vst.msk [vmem:[#allocation3 + $0x18] sm:$0xff] %vm504, 0.0
          %509 = vst.msk [vmem:[#allocation3 + $0x20] sm:$0xff] %vm504, 0.0
          %510 = vst.msk [vmem:[#allocation3 + $0x28] sm:$0xff] %vm504, 0.0
          %511 = vst.msk [vmem:[#allocation3 + $0x30] sm:$0xff] %vm504, 0.0
          %512 = vst.msk [vmem:[#allocation3 + $0x38] sm:$0xff] %vm504, 0.0
        $region94: #{base_gcn_forward.3} parent=85 // pred_fallthru
          _
        %v513 = vld [vmem:[%s391] sm:$0xff]
        %v514 = vld [vmem:[%s391 + $0x8] sm:$0xff]
        %v515 = vld [vmem:[%s391 + $0x10] sm:$0xff]
        %v516 = vld [vmem:[%s391 + $0x18] sm:$0xff]
        %v517 = vld [vmem:[%s391 + $0x20] sm:$0xff]
        %v518 = vld [vmem:[%s391 + $0x28] sm:$0xff]
        %v519 = vld [vmem:[%s391 + $0x30] sm:$0xff]
        %v520 = vld [vmem:[%s391 + $0x38] sm:$0xff]
        %v521 = vunpack.c.0.s8 %v513
        %v522 = vunpack.c.1.s8 %v513
        %v523 = vunpack.c.2.s8 %v513
        %v524 = vunpack.c.3.s8 %v513
        %v525 = vunpack.c.0.s8 %v514
        %v526 = vunpack.c.1.s8 %v514
        %v527 = vunpack.c.2.s8 %v514
        %v528 = vunpack.c.3.s8 %v514
        %v529 = vunpack.c.0.s8 %v515
        %v530 = vunpack.c.1.s8 %v515
        %v531 = vunpack.c.2.s8 %v515
        %v532 = vunpack.c.3.s8 %v515
        %v533 = vunpack.c.0.s8 %v516
        %v534 = vunpack.c.1.s8 %v516
        %v535 = vunpack.c.2.s8 %v516
        %v536 = vunpack.c.3.s8 %v516
        %v537 = vunpack.c.0.s8 %v517
        %v538 = vunpack.c.1.s8 %v517
        %v539 = vunpack.c.2.s8 %v517
        %v540 = vunpack.c.3.s8 %v517
        %v541 = vunpack.c.0.s8 %v518
        %v542 = vunpack.c.1.s8 %v518
        %v543 = vunpack.c.2.s8 %v518
        %v544 = vunpack.c.3.s8 %v518
        %v545 = vunpack.c.0.s8 %v519
        %v546 = vunpack.c.1.s8 %v519
        %v547 = vunpack.c.2.s8 %v519
        %v548 = vunpack.c.3.s8 %v519
        %v549 = vunpack.c.0.s8 %v520
        %v550 = vunpack.c.1.s8 %v520
        %v551 = vunpack.c.2.s8 %v520
        %v552 = vunpack.c.3.s8 %v520
        %v553 = vcvt.s32.f32 %v521
        %v554 = vcvt.s32.f32 %v522
        %v555 = vcvt.s32.f32 %v523
        %v556 = vcvt.s32.f32 %v524
        %v557 = vcvt.s32.f32 %v525
        %v558 = vcvt.s32.f32 %v526
        %v559 = vcvt.s32.f32 %v527
        %v560 = vcvt.s32.f32 %v528
        %v561 = vcvt.s32.f32 %v529
        %v562 = vcvt.s32.f32 %v530
        %v563 = vcvt.s32.f32 %v531
        %v564 = vcvt.s32.f32 %v532
        %v565 = vcvt.s32.f32 %v533
        %v566 = vcvt.s32.f32 %v534
        %v567 = vcvt.s32.f32 %v535
        %v568 = vcvt.s32.f32 %v536
        %v569 = vcvt.s32.f32 %v537
        %v570 = vcvt.s32.f32 %v538
        %v571 = vcvt.s32.f32 %v539
        %v572 = vcvt.s32.f32 %v540
        %v573 = vcvt.s32.f32 %v541
        %v574 = vcvt.s32.f32 %v542
        %v575 = vcvt.s32.f32 %v543
        %v576 = vcvt.s32.f32 %v544
        %v577 = vcvt.s32.f32 %v545
        %v578 = vcvt.s32.f32 %v546
        %v579 = vcvt.s32.f32 %v547
        %v580 = vcvt.s32.f32 %v548
        %v581 = vcvt.s32.f32 %v549
        %v582 = vcvt.s32.f32 %v550
        %v583 = vcvt.s32.f32 %v551
        %v584 = vcvt.s32.f32 %v552
        %v585 = vpack.c.bf16 %v554, %v553
        %v586 = vpack.c.bf16 %v556, %v555
        %v587 = vpack.c.bf16 %v558, %v557
        %v588 = vpack.c.bf16 %v560, %v559
        %v589 = vpack.c.bf16 %v562, %v561
        %v590 = vpack.c.bf16 %v564, %v563
        %v591 = vpack.c.bf16 %v566, %v565
        %v592 = vpack.c.bf16 %v568, %v567
        %v593 = vpack.c.bf16 %v570, %v569
        %v594 = vpack.c.bf16 %v572, %v571
        %v595 = vpack.c.bf16 %v574, %v573
        %v596 = vpack.c.bf16 %v576, %v575
        %v597 = vpack.c.bf16 %v578, %v577
        %v598 = vpack.c.bf16 %v580, %v579
        %v599 = vpack.c.bf16 %v582, %v581
        %v600 = vpack.c.bf16 %v584, %v583
        %v601 = vld [vmem:[#allocation2] sm:$0xf]
        %v602 = vld [vmem:[#allocation2 + $0x4] sm:$0xf]
        %v603 = vld [vmem:[#allocation2 + $0x8] sm:$0xf]
        %v604 = vld [vmem:[#allocation2 + $0xc] sm:$0xf]
        %v605 = vld [vmem:[#allocation2 + $0x10] sm:$0xf]
        %v606 = vld [vmem:[#allocation2 + $0x14] sm:$0xf]
        %v607 = vld [vmem:[#allocation2 + $0x18] sm:$0xf]
        %v608 = vld [vmem:[#allocation2 + $0x1c] sm:$0xf]
        %v609 = vld [vmem:[%s398] sm:$0xf]
        %v610 = vld [vmem:[%s398 + $0x4] sm:$0xf]
        %v611 = vld [vmem:[%s398 + $0x8] sm:$0xf]
        %v612 = vld [vmem:[%s398 + $0xc] sm:$0xf]
        %v613 = vld [vmem:[%s398 + $0x10] sm:$0xf]
        %v614 = vld [vmem:[%s398 + $0x14] sm:$0xf]
        %v615 = vld [vmem:[%s398 + $0x18] sm:$0xf]
        %v616 = vld [vmem:[%s398 + $0x1c] sm:$0xf]
        %v617 = vld [vmem:[%s398 + $0x20] sm:$0xf]
        %v618 = vld [vmem:[%s398 + $0x24] sm:$0xf]
        %v619 = vld [vmem:[%s398 + $0x28] sm:$0xf]
        %v620 = vld [vmem:[%s398 + $0x2c] sm:$0xf]
        %v621 = vld [vmem:[%s398 + $0x30] sm:$0xf]
        %v622 = vld [vmem:[%s398 + $0x34] sm:$0xf]
        %v623 = vld [vmem:[%s398 + $0x38] sm:$0xf]
        %v624 = vld [vmem:[%s398 + $0x3c] sm:$0xf]
        %v625 = vld [vmem:[%s398 + $0x40] sm:$0xf]
        %v626 = vld [vmem:[%s398 + $0x44] sm:$0xf]
        %v627 = vld [vmem:[%s398 + $0x48] sm:$0xf]
        %v628 = vld [vmem:[%s398 + $0x4c] sm:$0xf]
        %v629 = vld [vmem:[%s398 + $0x50] sm:$0xf]
        %v630 = vld [vmem:[%s398 + $0x54] sm:$0xf]
        %v631 = vld [vmem:[%s398 + $0x58] sm:$0xf]
        %v632 = vld [vmem:[%s398 + $0x5c] sm:$0xf]
        %v633 = vld [vmem:[%s398 + $0x60] sm:$0xf]
        %v634 = vld [vmem:[%s398 + $0x64] sm:$0xf]
        %v635 = vld [vmem:[%s398 + $0x68] sm:$0xf]
        %v636 = vld [vmem:[%s398 + $0x6c] sm:$0xf]
        %v637 = vld [vmem:[%s398 + $0x70] sm:$0xf]
        %v638 = vld [vmem:[%s398 + $0x74] sm:$0xf]
        %v639 = vld [vmem:[%s398 + $0x78] sm:$0xf]
        %v640 = vld [vmem:[%s398 + $0x7c] sm:$0xf]
        %v641 = vunpack.c.l.bf16 %v609
        %v642 = vunpack.c.l.bf16 %v610
        %v643 = vunpack.c.l.bf16 %v611
        %v644 = vunpack.c.l.bf16 %v612
        %v645 = vunpack.c.l.bf16 %v613
        %v646 = vunpack.c.l.bf16 %v614
        %v647 = vunpack.c.l.bf16 %v615
        %v648 = vunpack.c.l.bf16 %v616
        %v649 = vunpack.c.l.bf16 %v617
        %v650 = vunpack.c.l.bf16 %v618
        %v651 = vunpack.c.l.bf16 %v619
        %v652 = vunpack.c.l.bf16 %v620
        %v653 = vunpack.c.l.bf16 %v621
        %v654 = vunpack.c.l.bf16 %v622
        %v655 = vunpack.c.l.bf16 %v623
        %v656 = vunpack.c.l.bf16 %v624
        %v657 = vunpack.c.l.bf16 %v625
        %v658 = vunpack.c.l.bf16 %v626
        %v659 = vunpack.c.l.bf16 %v627
        %v660 = vunpack.c.l.bf16 %v628
        %v661 = vunpack.c.l.bf16 %v629
        %v662 = vunpack.c.l.bf16 %v630
        %v663 = vunpack.c.l.bf16 %v631
        %v664 = vunpack.c.l.bf16 %v632
        %v665 = vunpack.c.l.bf16 %v633
        %v666 = vunpack.c.l.bf16 %v634
        %v667 = vunpack.c.l.bf16 %v635
        %v668 = vunpack.c.l.bf16 %v636
        %v669 = vunpack.c.l.bf16 %v637
        %v670 = vunpack.c.l.bf16 %v638
        %v671 = vunpack.c.l.bf16 %v639
        %v672 = vunpack.c.l.bf16 %v640
        %v681 = vunpack.c.l.b16 %v601
        %v682 = vunpack.c.l.b16 %v602
        %v683 = vunpack.c.l.b16 %v603
        %v684 = vunpack.c.l.b16 %v604
        %v685 = vunpack.c.l.b16 %v605
        %v686 = vunpack.c.l.b16 %v606
        %v687 = vunpack.c.l.b16 %v607
        %v688 = vunpack.c.l.b16 %v608
        %v689 = vpack.c.b16 %v682, %v681
        %v690 = vpack.c.b16 %v684, %v683
        %v691 = vpack.c.b16 %v686, %v685
        %v692 = vpack.c.b16 %v688, %v687
        %vm697 = vcmask 523264
        %v699 = vsel %vm697, %v585, 0
        %v702 = vsel %vm697, %v586, 0
        %v705 = vsel %vm697, %v587, 0
        %v708 = vsel %vm697, %v588, 0
        %v711 = vsel %vm697, %v589, 0
        %v714 = vsel %vm697, %v590, 0
        %v717 = vsel %vm697, %v591, 0
        %v720 = vsel %vm697, %v592, 0
        %v723 = vsel %vm697, %v593, 0
        %v726 = vsel %vm697, %v594, 0
        %v729 = vsel %vm697, %v595, 0
        %v732 = vsel %vm697, %v596, 0
        %v735 = vsel %vm697, %v597, 0
        %v738 = vsel %vm697, %v598, 0
        %v741 = vsel %vm697, %v599, 0
        %v744 = vsel %vm697, %v600, 0
        %746 = vmatpush.bf16.msra.mxu0 0
        %747 = vmatpush.bf16.msra.mxu0 0
        %748 = vmatpush.bf16.msra.mxu0 0
        %749 = vmatpush.bf16.msra.mxu0 0
        %750 = vmatpush.bf16.msra.mxu0 %v692
        %751 = vmatpush.bf16.msra.mxu0 %v691
        %752 = vmatpush.bf16.msra.mxu0 %v690
        %753 = vmatpush.bf16.msra.mxu0 %v689
        %754 = vmatmul.bf16.gmra.mxu0 %v699
        %v755 = vpop.f32.mrf.mxu0
        %v756 = vadd.f32 %v641, %v755
        %v757 = vpop.f32.mrf.mxu0
        %v758 = vadd.f32 %v642, %v757
        %759 = vmatmul.bf16.gmra.mxu0 %v702
        %v760 = vpop.f32.mrf.mxu0
        %v761 = vadd.f32 %v643, %v760
        %v762 = vpop.f32.mrf.mxu0
        %v763 = vadd.f32 %v644, %v762
        %764 = vmatmul.bf16.gmra.mxu0 %v705
        %v765 = vpop.f32.mrf.mxu0
        %v766 = vadd.f32 %v645, %v765
        %v767 = vpop.f32.mrf.mxu0
        %v768 = vadd.f32 %v646, %v767
        %769 = vmatmul.bf16.gmra.mxu0 %v708
        %v770 = vpop.f32.mrf.mxu0
        %v771 = vadd.f32 %v647, %v770
        %v772 = vpop.f32.mrf.mxu0
        %v773 = vadd.f32 %v648, %v772
        %774 = vmatmul.bf16.gmra.mxu0 %v711
        %v775 = vpop.f32.mrf.mxu0
        %v776 = vadd.f32 %v649, %v775
        %v777 = vpop.f32.mrf.mxu0
        %v778 = vadd.f32 %v650, %v777
        %779 = vmatmul.bf16.gmra.mxu0 %v714
        %v780 = vpop.f32.mrf.mxu0
        %v781 = vadd.f32 %v651, %v780
        %v782 = vpop.f32.mrf.mxu0
        %v783 = vadd.f32 %v652, %v782
        %784 = vmatmul.bf16.gmra.mxu0 %v717
        %v785 = vpop.f32.mrf.mxu0
        %v786 = vadd.f32 %v653, %v785
        %v787 = vpop.f32.mrf.mxu0
        %v788 = vadd.f32 %v654, %v787
        %789 = vmatmul.bf16.gmra.mxu0 %v720
        %v790 = vpop.f32.mrf.mxu0
        %v791 = vadd.f32 %v655, %v790
        %v792 = vpop.f32.mrf.mxu0
        %v793 = vadd.f32 %v656, %v792
        %794 = vmatmul.bf16.gmra.mxu0 %v723
        %v795 = vpop.f32.mrf.mxu0
        %v796 = vadd.f32 %v657, %v795
        %v797 = vpop.f32.mrf.mxu0
        %v798 = vadd.f32 %v658, %v797
        %799 = vmatmul.bf16.gmra.mxu0 %v726
        %v800 = vpop.f32.mrf.mxu0
        %v801 = vadd.f32 %v659, %v800
        %v802 = vpop.f32.mrf.mxu0
        %v803 = vadd.f32 %v660, %v802
        %804 = vmatmul.bf16.gmra.mxu0 %v729
        %v805 = vpop.f32.mrf.mxu0
        %v806 = vadd.f32 %v661, %v805
        %v807 = vpop.f32.mrf.mxu0
        %v808 = vadd.f32 %v662, %v807
        %809 = vmatmul.bf16.gmra.mxu0 %v732
        %v810 = vpop.f32.mrf.mxu0
        %v811 = vadd.f32 %v663, %v810
        %v812 = vpop.f32.mrf.mxu0
        %v813 = vadd.f32 %v664, %v812
        %814 = vmatmul.bf16.gmra.mxu0 %v735
        %v815 = vpop.f32.mrf.mxu0
        %v816 = vadd.f32 %v665, %v815
        %v817 = vpop.f32.mrf.mxu0
        %v818 = vadd.f32 %v666, %v817
        %819 = vmatmul.bf16.gmra.mxu0 %v738
        %v820 = vpop.f32.mrf.mxu0
        %v821 = vadd.f32 %v667, %v820
        %v822 = vpop.f32.mrf.mxu0
        %v823 = vadd.f32 %v668, %v822
        %824 = vmatmul.bf16.gmra.mxu0 %v741
        %v825 = vpop.f32.mrf.mxu0
        %v826 = vadd.f32 %v669, %v825
        %v827 = vpop.f32.mrf.mxu0
        %v828 = vadd.f32 %v670, %v827
        %829 = vmatmul.bf16.gmra.mxu0 %v744
        %v830 = vpop.f32.mrf.mxu0
        %v831 = vadd.f32 %v671, %v830
        %v832 = vpop.f32.mrf.mxu0
        %v833 = vadd.f32 %v672, %v832
        %834 = vdwg.mxu0
        %v835 = vmax.f32 %v756, 0.0
        %v836 = vmax.f32 %v758, 0.0
        %v837 = vmax.f32 %v761, 0.0
        %v838 = vmax.f32 %v763, 0.0
        %v839 = vmax.f32 %v766, 0.0
        %v840 = vmax.f32 %v768, 0.0
        %v841 = vmax.f32 %v771, 0.0
        %v842 = vmax.f32 %v773, 0.0
        %v843 = vmax.f32 %v776, 0.0
        %v844 = vmax.f32 %v778, 0.0
        %v845 = vmax.f32 %v781, 0.0
        %v846 = vmax.f32 %v783, 0.0
        %v847 = vmax.f32 %v786, 0.0
        %v848 = vmax.f32 %v788, 0.0
        %v849 = vmax.f32 %v791, 0.0
        %v850 = vmax.f32 %v793, 0.0
        %v851 = vmax.f32 %v796, 0.0
        %v852 = vmax.f32 %v798, 0.0
        %v853 = vmax.f32 %v801, 0.0
        %v854 = vmax.f32 %v803, 0.0
        %v855 = vmax.f32 %v806, 0.0
        %v856 = vmax.f32 %v808, 0.0
        %v857 = vmax.f32 %v811, 0.0
        %v858 = vmax.f32 %v813, 0.0
        %v859 = vmax.f32 %v816, 0.0
        %v860 = vmax.f32 %v818, 0.0
        %v861 = vmax.f32 %v821, 0.0
        %v862 = vmax.f32 %v823, 0.0
        %v863 = vmax.f32 %v826, 0.0
        %v864 = vmax.f32 %v828, 0.0
        %v865 = vmax.f32 %v831, 0.0
        %v866 = vmax.f32 %v833, 0.0
        %v867 = vld [vmem:[#allocation3] sm:$0xff]
        %v868 = vld [vmem:[#allocation3 + $0x8] sm:$0xff]
        %v869 = vld [vmem:[#allocation3 + $0x10] sm:$0xff]
        %v870 = vld [vmem:[#allocation3 + $0x18] sm:$0xff]
        %v871 = vld [vmem:[#allocation3 + $0x20] sm:$0xff]
        %v872 = vld [vmem:[#allocation3 + $0x28] sm:$0xff]
        %v873 = vld [vmem:[#allocation3 + $0x30] sm:$0xff]
        %v874 = vld [vmem:[#allocation3 + $0x38] sm:$0xff]
        %v875 = vld [vmem:[%s351] sm:$0xff]
        %v876 = vld [vmem:[%s351 + $0x8] sm:$0xff]
        %v877 = vld [vmem:[%s351 + $0x10] sm:$0xff]
        %v878 = vld [vmem:[%s351 + $0x18] sm:$0xff]
        %v879 = vld [vmem:[%s351 + $0x20] sm:$0xff]
        %v880 = vld [vmem:[%s351 + $0x28] sm:$0xff]
        %v881 = vld [vmem:[%s351 + $0x30] sm:$0xff]
        %v882 = vld [vmem:[%s351 + $0x38] sm:$0xff]
        %v883 = vpack.c.bf16 %v836, %v835
        %v884 = vpack.c.bf16 %v838, %v837
        %v885 = vpack.c.bf16 %v840, %v839
        %v886 = vpack.c.bf16 %v842, %v841
        %v887 = vpack.c.bf16 %v844, %v843
        %v888 = vpack.c.bf16 %v846, %v845
        %v889 = vpack.c.bf16 %v848, %v847
        %v890 = vpack.c.bf16 %v850, %v849
        %v891 = vpack.c.bf16 %v852, %v851
        %v892 = vpack.c.bf16 %v854, %v853
        %v893 = vpack.c.bf16 %v856, %v855
        %v894 = vpack.c.bf16 %v858, %v857
        %v895 = vpack.c.bf16 %v860, %v859
        %v896 = vpack.c.bf16 %v862, %v861
        %v897 = vpack.c.bf16 %v864, %v863
        %v898 = vpack.c.bf16 %v866, %v865
        %v907 = vunpack.c.l.b16 %v875
        %v908 = vunpack.c.h.b16 %v875
        %v909 = vunpack.c.l.b16 %v876
        %v910 = vunpack.c.h.b16 %v876
        %v911 = vunpack.c.l.b16 %v877
        %v912 = vunpack.c.h.b16 %v877
        %v913 = vunpack.c.l.b16 %v878
        %v914 = vunpack.c.h.b16 %v878
        %v915 = vunpack.c.l.b16 %v879
        %v916 = vunpack.c.h.b16 %v879
        %v917 = vunpack.c.l.b16 %v880
        %v918 = vunpack.c.h.b16 %v880
        %v919 = vunpack.c.l.b16 %v881
        %v920 = vunpack.c.h.b16 %v881
        %v921 = vunpack.c.l.b16 %v882
        %v922 = vunpack.c.h.b16 %v882
        %v923 = vpack.c.b16 %v909, %v907
        %v924 = vpack.c.b16 %v910, %v908
        %v925 = vpack.c.b16 %v913, %v911
        %v926 = vpack.c.b16 %v914, %v912
        %v927 = vpack.c.b16 %v917, %v915
        %v928 = vpack.c.b16 %v918, %v916
        %v929 = vpack.c.b16 %v921, %v919
        %v930 = vpack.c.b16 %v922, %v920
        %939 = vmatpush.bf16.msra.mxu0 %v890
        %940 = vmatpush.bf16.msra.mxu0 %v889
        %941 = vmatpush.bf16.msra.mxu0 %v888
        %942 = vmatpush.bf16.msra.mxu0 %v887
        %943 = vmatpush.bf16.msra.mxu0 %v886
        %944 = vmatpush.bf16.msra.mxu0 %v885
        %945 = vmatpush.bf16.msra.mxu0 %v884
        %946 = vmatpush.bf16.msra.mxu0 %v883
        %947 = vmatmul.bf16.gmra.mxu0 %v923
        %v948 = vpop.f32.mrf.mxu0
        %v949 = vadd.f32 0.0, %v948
        %v950 = vpop.f32.mrf.mxu0
        %v951 = vadd.f32 0.0, %v950
        %952 = vmatmul.bf16.gmra.mxu0 %v925
        %v953 = vpop.f32.mrf.mxu0
        %v954 = vadd.f32 0.0, %v953
        %v955 = vpop.f32.mrf.mxu0
        %v956 = vadd.f32 0.0, %v955
        %957 = vmatmul.bf16.gmra.mxu0 %v927
        %v958 = vpop.f32.mrf.mxu0
        %v959 = vadd.f32 0.0, %v958
        %v960 = vpop.f32.mrf.mxu0
        %v961 = vadd.f32 0.0, %v960
        %962 = vmatmul.bf16.gmra.mxu0 %v929
        %v963 = vpop.f32.mrf.mxu0
        %v964 = vadd.f32 0.0, %v963
        %v965 = vpop.f32.mrf.mxu0
        %v966 = vadd.f32 0.0, %v965
        %967 = vdwg.mxu0
        %968 = vmatpush.bf16.msra.mxu0 %v898
        %969 = vmatpush.bf16.msra.mxu0 %v897
        %970 = vmatpush.bf16.msra.mxu0 %v896
        %971 = vmatpush.bf16.msra.mxu0 %v895
        %972 = vmatpush.bf16.msra.mxu0 %v894
        %973 = vmatpush.bf16.msra.mxu0 %v893
        %974 = vmatpush.bf16.msra.mxu0 %v892
        %975 = vmatpush.bf16.msra.mxu0 %v891
        %976 = vmatmul.bf16.gmra.mxu0 %v924
        %v977 = vpop.f32.mrf.mxu0
        %v978 = vadd.f32 %v949, %v977
        %v979 = vpop.f32.mrf.mxu0
        %v980 = vadd.f32 %v951, %v979
        %981 = vmatmul.bf16.gmra.mxu0 %v926
        %v982 = vpop.f32.mrf.mxu0
        %v983 = vadd.f32 %v954, %v982
        %v984 = vpop.f32.mrf.mxu0
        %v985 = vadd.f32 %v956, %v984
        %986 = vmatmul.bf16.gmra.mxu0 %v928
        %v987 = vpop.f32.mrf.mxu0
        %v988 = vadd.f32 %v959, %v987
        %v989 = vpop.f32.mrf.mxu0
        %v990 = vadd.f32 %v961, %v989
        %991 = vmatmul.bf16.gmra.mxu0 %v930
        %v992 = vpop.f32.mrf.mxu0
        %v993 = vadd.f32 %v964, %v992
        %v994 = vpop.f32.mrf.mxu0
        %v995 = vadd.f32 %v966, %v994
        %996 = vdwg.mxu0
        %v997 = vadd.f32 %v867, %v978
        %v998 = vadd.f32 %v868, %v980
        %v999 = vadd.f32 %v869, %v983
        %v1000 = vadd.f32 %v870, %v985
        %v1001 = vadd.f32 %v871, %v988
        %v1002 = vadd.f32 %v872, %v990
        %v1003 = vadd.f32 %v873, %v993
        %v1004 = vadd.f32 %v874, %v995
        %vm1005 = vcmask 261120
        %1006 = vst.msk [vmem:[#allocation3] sm:$0xff] %vm1005, %v997
        %1007 = vst.msk [vmem:[#allocation3 + $0x8] sm:$0xff] %vm1005, %v998
        %1008 = vst.msk [vmem:[#allocation3 + $0x10] sm:$0xff] %vm1005, %v999
        %1009 = vst.msk [vmem:[#allocation3 + $0x18] sm:$0xff] %vm1005, %v1000
        %1010 = vst.msk [vmem:[#allocation3 + $0x20] sm:$0xff] %vm1005, %v1001
        %1011 = vst.msk [vmem:[#allocation3 + $0x28] sm:$0xff] %vm1005, %v1002
        %1012 = vst.msk [vmem:[#allocation3 + $0x30] sm:$0xff] %vm1005, %v1003
        %1013 = vst.msk [vmem:[#allocation3 + $0x38] sm:$0xff] %vm1005, %v1004
        %p1014 = scmp.eq.s32.totalorder %s19, 1
        // Predicated region
        $region95: #{base_gcn_forward.3} parent=85 // pred_check
          %p1015 = pneg %p1014
        $region96: #{base_gcn_forward.3} parent=85 // pred_check_branch
          %1017 = sbr.rel (%p1015) target = $region98
        $region97: #{base_gcn_forward.3} parent=85 // pred_region
          %v1018 = vld [vmem:[#allocation3] sm:$0xff]
          %v1019 = vld [vmem:[#allocation3 + $0x8] sm:$0xff]
          %v1020 = vld [vmem:[#allocation3 + $0x10] sm:$0xff]
          %v1021 = vld [vmem:[#allocation3 + $0x18] sm:$0xff]
          %v1022 = vld [vmem:[#allocation3 + $0x20] sm:$0xff]
          %v1023 = vld [vmem:[#allocation3 + $0x28] sm:$0xff]
          %v1024 = vld [vmem:[#allocation3 + $0x30] sm:$0xff]
          %v1025 = vld [vmem:[#allocation3 + $0x38] sm:$0xff]
          %v1026 = vsel %vm1005, %v1018, 0.0
          %v1027 = vsel %vm1005, %v1019, 0.0
          %v1028 = vadd.f32 %v1026, %v1027
          %v1029 = vsel %vm1005, %v1020, 0.0
          %v1030 = vadd.f32 %v1028, %v1029
          %v1031 = vsel %vm1005, %v1021, 0.0
          %v1032 = vadd.f32 %v1030, %v1031
          %v1033 = vsel %vm1005, %v1022, 0.0
          %v1034 = vadd.f32 %v1032, %v1033
          %v1035 = vsel %vm1005, %v1023, 0.0
          %v1036 = vadd.f32 %v1034, %v1035
          %v1037 = vsel %vm1005, %v1024, 0.0
          %v1038 = vadd.f32 %v1036, %v1037
          %v1039 = vsel %vm1005, %v1025, 0.0
          %v1040 = vadd.f32 %v1038, %v1039
          %v1041 = vrot.slane %v1040, 4
          %v1042 = vadd.f32 %v1040, %v1041
          %v1043 = vrot.slane %v1042, 2
          %v1044 = vadd.f32 %v1042, %v1043
          %v1045 = vrot.slane %v1044, 1
          %v1046 = vadd.f32 %v1044, %v1045
          %v1047 = vrcp.pop 64.0
          %v1048 = vmul.f32 64.0, %v1047
          %v1049 = vsub.f32 1.0, %v1048
          %v1050 = vmul.f32 %v1047, %v1049
          %v1051 = vadd.f32 %v1047, %v1050
          %vm1052 = vweird.f32 %v1047
          %v1053 = vsel %vm1052, %v1047, %v1051
          %v1054 = vmul.f32 %v1046, %v1053
          %v1055 = vsub.f32 %v1018, %v1054
          %v1056 = vsub.f32 %v1019, %v1054
          %v1057 = vsub.f32 %v1020, %v1054
          %v1058 = vsub.f32 %v1021, %v1054
          %v1059 = vsub.f32 %v1022, %v1054
          %v1060 = vsub.f32 %v1023, %v1054
          %v1061 = vsub.f32 %v1024, %v1054
          %v1062 = vsub.f32 %v1025, %v1054
          %v1063 = vmul.f32 %v1055, %v1055
          %v1064 = vmul.f32 %v1056, %v1056
          %v1065 = vmul.f32 %v1057, %v1057
          %v1066 = vmul.f32 %v1058, %v1058
          %v1067 = vmul.f32 %v1059, %v1059
          %v1068 = vmul.f32 %v1060, %v1060
          %v1069 = vmul.f32 %v1061, %v1061
          %v1070 = vmul.f32 %v1062, %v1062
          %v1071 = vsel %vm1005, %v1063, 0.0
          %v1072 = vsel %vm1005, %v1064, 0.0
          %v1073 = vadd.f32 %v1071, %v1072
          %v1074 = vsel %vm1005, %v1065, 0.0
          %v1075 = vadd.f32 %v1073, %v1074
          %v1076 = vsel %vm1005, %v1066, 0.0
          %v1077 = vadd.f32 %v1075, %v1076
          %v1078 = vsel %vm1005, %v1067, 0.0
          %v1079 = vadd.f32 %v1077, %v1078
          %v1080 = vsel %vm1005, %v1068, 0.0
          %v1081 = vadd.f32 %v1079, %v1080
          %v1082 = vsel %vm1005, %v1069, 0.0
          %v1083 = vadd.f32 %v1081, %v1082
          %v1084 = vsel %vm1005, %v1070, 0.0
          %v1085 = vadd.f32 %v1083, %v1084
          %v1086 = vrot.slane %v1085, 4
          %v1087 = vadd.f32 %v1085, %v1086
          %v1088 = vrot.slane %v1087, 2
          %v1089 = vadd.f32 %v1087, %v1088
          %v1090 = vrot.slane %v1089, 1
          %v1091 = vadd.f32 %v1089, %v1090
          %v1092 = vmul.f32 %v1091, %v1053
          %v1093 = vadd.f32 %v1092, 1e-05
          %v1094 = vrsqrt.pop %v1093
          %v1095 = vmul.f32 %v1094, %v1093
          %v1096 = vmul.f32 %v1095, %v1094
          %v1097 = vmul.f32 0.5, %v1096
          %v1098 = vsub.f32 1.5, %v1097
          %v1099 = vmul.f32 %v1094, %v1098
          %vm1100 = vweird.f32 %v1093
          %vm1101 = vweird.f32 %v1094
          %vm1102 = vmor %vm1100, %vm1101
          %v1103 = vsel %vm1102, %v1094, %v1099
          %v1104 = vmul.f32 %v1055, %v1103
          %v1105 = vmul.f32 %v1056, %v1103
          %v1106 = vmul.f32 %v1057, %v1103
          %v1107 = vmul.f32 %v1058, %v1103
          %v1108 = vmul.f32 %v1059, %v1103
          %v1109 = vmul.f32 %v1060, %v1103
          %v1110 = vmul.f32 %v1061, %v1103
          %v1111 = vmul.f32 %v1062, %v1103
          %v1112 = vld [vmem:[%s6] sm:$0x1]
          %v1114 = vperm.slane %v1112, 0
          %v1116 = vmul.f32 %v1104, %v1114
          %v1117 = vmul.f32 %v1105, %v1114
          %v1118 = vmul.f32 %v1106, %v1114
          %v1119 = vmul.f32 %v1107, %v1114
          %v1120 = vmul.f32 %v1108, %v1114
          %v1121 = vmul.f32 %v1109, %v1114
          %v1122 = vmul.f32 %v1110, %v1114
          %v1123 = vmul.f32 %v1111, %v1114
          %v1124 = vld [vmem:[%s7] sm:$0x1]
          %v1126 = vperm.slane %v1124, 0
          %v1128 = vadd.f32 %v1116, %v1126
          %v1129 = vadd.f32 %v1117, %v1126
          %v1130 = vadd.f32 %v1118, %v1126
          %v1131 = vadd.f32 %v1119, %v1126
          %v1132 = vadd.f32 %v1120, %v1126
          %v1133 = vadd.f32 %v1121, %v1126
          %v1134 = vadd.f32 %v1122, %v1126
          %v1135 = vadd.f32 %v1123, %v1126
          %v1136 = vmax.f32 %v1128, 0.0
          %v1137 = vmax.f32 %v1129, 0.0
          %v1138 = vmax.f32 %v1130, 0.0
          %v1139 = vmax.f32 %v1131, 0.0
          %v1140 = vmax.f32 %v1132, 0.0
          %v1141 = vmax.f32 %v1133, 0.0
          %v1142 = vmax.f32 %v1134, 0.0
          %v1143 = vmax.f32 %v1135, 0.0
          %v1144 = vpack.c.bf16 %v1136, %v1136
          %v1145 = vpack.c.bf16 %v1137, %v1137
          %v1146 = vpack.c.bf16 %v1138, %v1138
          %v1147 = vpack.c.bf16 %v1139, %v1139
          %v1148 = vpack.c.bf16 %v1140, %v1140
          %v1149 = vpack.c.bf16 %v1141, %v1141
          %v1150 = vpack.c.bf16 %v1142, %v1142
          %v1151 = vpack.c.bf16 %v1143, %v1143
          %vm1152 = vcmask 257024
          %1153 = vst.msk [vmem:[%s8] sm:$0xf] %vm1152, %v1144
          %1154 = vst.msk [vmem:[%s8 + $0x4] sm:$0xf] %vm1152, %v1145
          %1155 = vst.msk [vmem:[%s8 + $0x8] sm:$0xf] %vm1152, %v1146
          %1156 = vst.msk [vmem:[%s8 + $0xc] sm:$0xf] %vm1152, %v1147
          %1157 = vst.msk [vmem:[%s8 + $0x10] sm:$0xf] %vm1152, %v1148
          %1158 = vst.msk [vmem:[%s8 + $0x14] sm:$0xf] %vm1152, %v1149
          %1159 = vst.msk [vmem:[%s8 + $0x18] sm:$0xf] %vm1152, %v1150
          %1160 = vst.msk [vmem:[%s8 + $0x1c] sm:$0xf] %vm1152, %v1151
        $region98: #{base_gcn_forward.3} parent=85 // pred_fallthru
          _
        // Predicated region
        $region99: #{base_gcn_forward.3} parent=85 // pred_check
          %p1161 = pneg %p215
        $region100: #{base_gcn_forward.3} parent=85 // pred_check_branch
          %1163 = sbr.rel (%p1161) target = $region102
        $region101: #{base_gcn_forward.3} parent=85 // pred_region
          _
        $region102: #{base_gcn_forward.3} parent=85 // pred_fallthru
          _
        // Predicated region
        $region103: #{base_gcn_forward.3} parent=85 // pred_check
          %p1164 = pneg %p215
        $region104: #{base_gcn_forward.3} parent=85 // pred_check_branch
          %1166 = sbr.rel (%p1164) target = $region106
        $region105: #{base_gcn_forward.3} parent=85 // pred_region
          _
        $region106: #{base_gcn_forward.3} parent=85 // pred_fallthru
          _
      $region86: #{base_gcn_forward.3} parent=5 // pred_fallthru
        _
      %p1167 = scmp.le.s32.totalorder 2, %s14
      // Predicated region
      $region107: #{base_gcn_forward.3} parent=5 // pred_check
        %p1168 = pneg %p1167
      $region108: #{base_gcn_forward.3} parent=5 // pred_check_branch
        %1170 = sbr.rel (%p1168) target = $region110
      $region109: #{base_gcn_forward.3} parent=5 // pred_region
        %s1171 = ssub.s32 %s14, 2
      $region110: #{base_gcn_forward.3} parent=5 // pred_fallthru
        _
    $region6: #{base_gcn_forward.3} parent=1 // loop_footer
      %s18 = sadd.s32 1, %s14
    $region7: #{base_gcn_forward.3} parent=1 // loop_footer_branch
      %13 = sbr.rel target = $region3
    $region8: #{base_gcn_forward.3} parent=1 // loop_exit
      _

// kernel: base_gcn_forward.4
$region0: #{base_gcn_forward.4}
  #allocation0 [shape = 'u32[]', space=smem, size = 0x4, offset = 0x4, fixed_abs, tag = 'smem constant byte address 0x4 - core index']
  #allocation1 [shape = 'u32[72,128]{1,0:T(1,128)}', space=vmem, size = 0x9000, scoped, tag = 'internal scratch']
  #allocation2 [shape = 'bf16[64,32]{1,0:T(8,128)(2,1)}', space=vmem, size = 0x4000, scoped, tag = 'scratch operand']
  #allocation3 [shape = 'f32[64,32]{1,0:T(8,128)}', space=vmem, size = 0x8000, scoped, tag = 'scratch operand']
  %s0 = inlined_call_operand.vmem [shape: bf16[64,32], index: 0, kind: input, shape index: {}]
  %s1 = inlined_call_operand.vmem [shape: s8[512,64], index: 1, kind: input, shape index: {}]
  %s2 = inlined_call_operand.vmem [shape: bf16[64,512], index: 2, kind: input, shape index: {}]
  %s3 = inlined_call_operand.vmem [shape: bf16[512,32], index: 3, kind: input, shape index: {}]
  %s4 = inlined_call_operand.vmem [shape: bf16[32,32], index: 4, kind: input, shape index: {}]
  %s5 = inlined_call_operand.vmem [shape: f32[1,32], index: 5, kind: input, shape index: {}, may-alias: {5,7}]
  %s6 = inlined_call_operand.vmem [shape: f32[1,32], index: 6, kind: input, shape index: {}]
  %s7 = inlined_call_operand.vmem [shape: f32[1,32], index: 7, kind: input, shape index: {}, may-alias: {5,7}]
  %s8 = inlined_call_operand.vmem [shape: bf16[64,32], index: 8, kind: output, shape index: {}]
  %s9 = sld [smem:[#allocation0]]
  $region111: #{base_gcn_forward.4} parent=0
    _
  %s11 = ssub.s32 1, %s9
  %s12 = scalar_select 0, %s11, %s9
  $region1: #{base_gcn_forward.4} parent=0
    #allocation4 [shape = 'u8[65536]{0}', space=vmem, size = 0x10000, scoped, tag = 'input window, operand 2']
    loop: start=0, step=1, limit=4
    $region2: #{base_gcn_forward.4} parent=1 // loop_pre_header
      _
    $region3: #{base_gcn_forward.4} parent=1 // loop_header
      %s14 = sphi 0, %s18
      %p15 = scmp.ge.s32.totalorder %s14, 4
      %s22 = sphi 0, %s22
      %s24 = sphi 0, %s22
      %s25 = sphi 0, %s24
      %s39 = sphi 0, %s25
      %s45 = sphi 0, %s47
      %s48 = sphi 0, %s45
      %s49 = sphi 0, %s48
      %s65 = sphi 0, %s49
      %s71 = sphi 0, %s73
      %s74 = sphi 0, %s71
      %s75 = sphi 0, %s74
      %s91 = sphi 0, %s75
      %s97 = sphi 0, %s99
      %s100 = sphi 0, %s97
      %s101 = sphi 0, %s100
      %s117 = sphi 0, %s101
      %s121 = sphi 0, %s121
      %s123 = sphi 0, %s121
      %s124 = sphi 0, %s123
      %s138 = sphi 0, %s124
      %s142 = sphi 0, %s142
      %s144 = sphi 0, %s142
      %s145 = sphi 0, %s144
      %s159 = sphi 0, %s145
      %s163 = sphi 0, %s163
      %s165 = sphi 0, %s163
      %s166 = sphi 0, %s165
      %s180 = sphi 0, %s166
      %s184 = sphi 0, %s184
      %s186 = sphi 0, %s184
      %s187 = sphi 0, %s186
      %s201 = sphi 0, %s187
      %s205 = sphi 0, %s205
      %s207 = sphi 0, %s205
      %s208 = sphi 0, %s207
      %s222 = sphi 0, %s208
    $region4: #{base_gcn_forward.4} parent=1 // loop_header_branch
      %17 = sbr.rel (%p15) target = $region8
    $region5: #{base_gcn_forward.4} parent=1 // loop_body
      %s19 = ssub.s32 %s14, 1
      %s20 = ssub.s32 %s14, 2
      %s21 = sadd.s32 %s14, 1
      %s23 = sadd.s32 %s22, 1
      %p26 = scmp.eq.s32.totalorder %s14, 1
      %p27 = scmp.ne.s32.totalorder %s22, %s24
      %p28 = scmp.eq.s32.totalorder %s14, 0
      %p29 = por %p27, %p28
      %p30 = scmp.ne.s32.totalorder %s22, %s24
      %p31 = scmp.eq.s32.totalorder %s19, 1
      %p32 = por %p30, %p31
      %p33 = scmp.ne.s32.totalorder %s24, %s25
      %p34 = scmp.eq.s32.totalorder %s19, 0
      %p35 = por %p33, %p34
      %p36 = scmp.ne.s32.totalorder %s24, %s25
      %p37 = scmp.eq.s32.totalorder %s20, 1
      %p38 = por %p36, %p37
      %p40 = scmp.ne.s32.totalorder %s25, %s39
      %p41 = scmp.eq.s32.totalorder %s20, 0
      %p42 = por %p40, %p41
      %s43 = ssub.s32 %s14, %s21
      %p44 = scmp.eq.s32.totalorder %s43, 0
      %s46 = sadd.s32 %s45, 1
      %s47 = scalar_select %p44, %s45, %s46
      %p50 = pneg %p44
      %p51 = scmp.eq.s32.totalorder %s14, 1
      %p52 = por %p50, %p51
      %p53 = scmp.ne.s32.totalorder %s45, %s48
      %p54 = scmp.eq.s32.totalorder %s14, 0
      %p55 = por %p53, %p54
      %p56 = scmp.ne.s32.totalorder %s45, %s48
      %p57 = scmp.eq.s32.totalorder %s19, 1
      %p58 = por %p56, %p57
      %p59 = scmp.ne.s32.totalorder %s48, %s49
      %p60 = scmp.eq.s32.totalorder %s19, 0
      %p61 = por %p59, %p60
      %p62 = scmp.ne.s32.totalorder %s48, %s49
      %p63 = scmp.eq.s32.totalorder %s20, 1
      %p64 = por %p62, %p63
      %p66 = scmp.ne.s32.totalorder %s49, %s65
      %p67 = scmp.eq.s32.totalorder %s20, 0
      %p68 = por %p66, %p67
      %s69 = ssub.s32 %s14, %s21
      %p70 = scmp.eq.s32.totalorder %s69, 0
      %s72 = sadd.s32 %s71, 1
      %s73 = scalar_select %p70, %s71, %s72
      %p76 = pneg %p70
      %p77 = scmp.eq.s32.totalorder %s14, 1
      %p78 = por %p76, %p77
      %p79 = scmp.ne.s32.totalorder %s71, %s74
      %p80 = scmp.eq.s32.totalorder %s14, 0
      %p81 = por %p79, %p80
      %p82 = scmp.ne.s32.totalorder %s71, %s74
      %p83 = scmp.eq.s32.totalorder %s19, 1
      %p84 = por %p82, %p83
      %p85 = scmp.ne.s32.totalorder %s74, %s75
      %p86 = scmp.eq.s32.totalorder %s19, 0
      %p87 = por %p85, %p86
      %p88 = scmp.ne.s32.totalorder %s74, %s75
      %p89 = scmp.eq.s32.totalorder %s20, 1
      %p90 = por %p88, %p89
      %p92 = scmp.ne.s32.totalorder %s75, %s91
      %p93 = scmp.eq.s32.totalorder %s20, 0
      %p94 = por %p92, %p93
      %s95 = ssub.s32 %s14, %s21
      %p96 = scmp.eq.s32.totalorder %s95, 0
      %s98 = sadd.s32 %s97, 1
      %s99 = scalar_select %p96, %s97, %s98
      %p102 = pneg %p96
      %p103 = scmp.eq.s32.totalorder %s14, 1
      %p104 = por %p102, %p103
      %p105 = scmp.ne.s32.totalorder %s97, %s100
      %p106 = scmp.eq.s32.totalorder %s14, 0
      %p107 = por %p105, %p106
      %p108 = scmp.ne.s32.totalorder %s97, %s100
      %p109 = scmp.eq.s32.totalorder %s19, 1
      %p110 = por %p108, %p109
      %p111 = scmp.ne.s32.totalorder %s100, %s101
      %p112 = scmp.eq.s32.totalorder %s19, 0
      %p113 = por %p111, %p112
      %p114 = scmp.ne.s32.totalorder %s100, %s101
      %p115 = scmp.eq.s32.totalorder %s20, 1
      %p116 = por %p114, %p115
      %p118 = scmp.ne.s32.totalorder %s101, %s117
      %p119 = scmp.eq.s32.totalorder %s20, 0
      %p120 = por %p118, %p119
      %s122 = sadd.s32 %s121, 1
      %p125 = scmp.eq.s32.totalorder %s14, 1
      %p126 = scmp.ne.s32.totalorder %s121, %s123
      %p127 = scmp.eq.s32.totalorder %s14, 0
      %p128 = por %p126, %p127
      %p129 = scmp.ne.s32.totalorder %s121, %s123
      %p130 = scmp.eq.s32.totalorder %s19, 1
      %p131 = por %p129, %p130
      %p132 = scmp.ne.s32.totalorder %s123, %s124
      %p133 = scmp.eq.s32.totalorder %s19, 0
      %p134 = por %p132, %p133
      %p135 = scmp.ne.s32.totalorder %s123, %s124
      %p136 = scmp.eq.s32.totalorder %s20, 1
      %p137 = por %p135, %p136
      %p139 = scmp.ne.s32.totalorder %s124, %s138
      %p140 = scmp.eq.s32.totalorder %s20, 0
      %p141 = por %p139, %p140
      %s143 = sadd.s32 %s142, 1
      %p146 = scmp.eq.s32.totalorder %s14, 1
      %p147 = scmp.ne.s32.totalorder %s142, %s144
      %p148 = scmp.eq.s32.totalorder %s14, 0
      %p149 = por %p147, %p148
      %p150 = scmp.ne.s32.totalorder %s142, %s144
      %p151 = scmp.eq.s32.totalorder %s19, 1
      %p152 = por %p150, %p151
      %p153 = scmp.ne.s32.totalorder %s144, %s145
      %p154 = scmp.eq.s32.totalorder %s19, 0
      %p155 = por %p153, %p154
      %p156 = scmp.ne.s32.totalorder %s144, %s145
      %p157 = scmp.eq.s32.totalorder %s20, 1
      %p158 = por %p156, %p157
      %p160 = scmp.ne.s32.totalorder %s145, %s159
      %p161 = scmp.eq.s32.totalorder %s20, 0
      %p162 = por %p160, %p161
      %s164 = sadd.s32 %s163, 1
      %p167 = scmp.eq.s32.totalorder %s14, 1
      %p168 = scmp.ne.s32.totalorder %s163, %s165
      %p169 = scmp.eq.s32.totalorder %s14, 0
      %p170 = por %p168, %p169
      %p171 = scmp.ne.s32.totalorder %s163, %s165
      %p172 = scmp.eq.s32.totalorder %s19, 1
      %p173 = por %p171, %p172
      %p174 = scmp.ne.s32.totalorder %s165, %s166
      %p175 = scmp.eq.s32.totalorder %s19, 0
      %p176 = por %p174, %p175
      %p177 = scmp.ne.s32.totalorder %s165, %s166
      %p178 = scmp.eq.s32.totalorder %s20, 1
      %p179 = por %p177, %p178
      %p181 = scmp.ne.s32.totalorder %s166, %s180
      %p182 = scmp.eq.s32.totalorder %s20, 0
      %p183 = por %p181, %p182
      %s185 = sadd.s32 %s184, 1
      %p188 = scmp.eq.s32.totalorder %s14, 1
      %p189 = scmp.ne.s32.totalorder %s184, %s186
      %p190 = scmp.eq.s32.totalorder %s14, 0
      %p191 = por %p189, %p190
      %p192 = scmp.ne.s32.totalorder %s184, %s186
      %p193 = scmp.eq.s32.totalorder %s19, 1
      %p194 = por %p192, %p193
      %p195 = scmp.ne.s32.totalorder %s186, %s187
      %p196 = scmp.eq.s32.totalorder %s19, 0
      %p197 = por %p195, %p196
      %p198 = scmp.ne.s32.totalorder %s186, %s187
      %p199 = scmp.eq.s32.totalorder %s20, 1
      %p200 = por %p198, %p199
      %p202 = scmp.ne.s32.totalorder %s187, %s201
      %p203 = scmp.eq.s32.totalorder %s20, 0
      %p204 = por %p202, %p203
      %s206 = sadd.s32 %s205, 1
      %p209 = scmp.eq.s32.totalorder %s14, 1
      %p210 = scmp.ne.s32.totalorder %s205, %s207
      %p211 = scmp.eq.s32.totalorder %s14, 0
      %p212 = por %p210, %p211
      %p213 = scmp.ne.s32.totalorder %s205, %s207
      %p214 = scmp.eq.s32.totalorder %s19, 1
      %p215 = por %p213, %p214
      %p216 = scmp.ne.s32.totalorder %s207, %s208
      %p217 = scmp.eq.s32.totalorder %s19, 0
      %p218 = por %p216, %p217
      %p219 = scmp.ne.s32.totalorder %s207, %s208
      %p220 = scmp.eq.s32.totalorder %s20, 1
      %p221 = por %p219, %p220
      %p223 = scmp.ne.s32.totalorder %s208, %s222
      %p224 = scmp.eq.s32.totalorder %s20, 0
      %p225 = por %p223, %p224
      %p226 = scmp.le.s32.totalorder 1, %s14
      %p227 = scmp.lt.s32.totalorder %s14, 3
      %p228 = pnand %p226, %p227
      %p229 = pneg %p228
      // Predicated region
      $region9: #{base_gcn_forward.4} parent=5 // pred_check
        _
      $region10: #{base_gcn_forward.4} parent=5 // pred_check_branch
        %231 = sbr.rel (%p228) target = $region12
      $region11: #{base_gcn_forward.4} parent=5 // pred_region
        %s232 = ssub.s32 %s14, 1
        // Predicated region
        $region13: #{base_gcn_forward.4} parent=11 // pred_check
          %p233 = pneg %p35
        $region14: #{base_gcn_forward.4} parent=11 // pred_check_branch
          %235 = sbr.rel (%p233) target = $region16
        $region15: #{base_gcn_forward.4} parent=11 // pred_region
          _
        $region16: #{base_gcn_forward.4} parent=11 // pred_fallthru
          _
        // Predicated region
        $region17: #{base_gcn_forward.4} parent=11 // pred_check
          %p236 = pneg %p134
        $region18: #{base_gcn_forward.4} parent=11 // pred_check_branch
          %238 = sbr.rel (%p236) target = $region20
        $region19: #{base_gcn_forward.4} parent=11 // pred_region
          _
        $region20: #{base_gcn_forward.4} parent=11 // pred_fallthru
          _
        // Predicated region
        $region21: #{base_gcn_forward.4} parent=11 // pred_check
          %p239 = pneg %p155
        $region22: #{base_gcn_forward.4} parent=11 // pred_check_branch
          %241 = sbr.rel (%p239) target = $region24
        $region23: #{base_gcn_forward.4} parent=11 // pred_region
          _
        $region24: #{base_gcn_forward.4} parent=11 // pred_fallthru
          _
        // Predicated region
        $region25: #{base_gcn_forward.4} parent=11 // pred_check
          %p242 = pneg %p176
        $region26: #{base_gcn_forward.4} parent=11 // pred_check_branch
          %244 = sbr.rel (%p242) target = $region28
        $region27: #{base_gcn_forward.4} parent=11 // pred_region
          _
        $region28: #{base_gcn_forward.4} parent=11 // pred_fallthru
          _
        // Predicated region
        $region29: #{base_gcn_forward.4} parent=11 // pred_check
          %p245 = pneg %p197
        $region30: #{base_gcn_forward.4} parent=11 // pred_check_branch
          %247 = sbr.rel (%p245) target = $region32
        $region31: #{base_gcn_forward.4} parent=11 // pred_region
          _
        $region32: #{base_gcn_forward.4} parent=11 // pred_fallthru
          _
      $region12: #{base_gcn_forward.4} parent=5 // pred_fallthru
        _
      %p248 = scmp.lt.s32.totalorder %s14, 2
      // Predicated region
      $region33: #{base_gcn_forward.4} parent=5 // pred_check
        %p249 = pneg %p248
      $region34: #{base_gcn_forward.4} parent=5 // pred_check_branch
        %251 = sbr.rel (%p249) target = $region36
      $region35: #{base_gcn_forward.4} parent=5 // pred_region
        // Predicated region
        $region37: #{base_gcn_forward.4} parent=35 // pred_check
          %p252 = pneg %p55
        $region38: #{base_gcn_forward.4} parent=35 // pred_check_branch
          %254 = sbr.rel (%p252) target = $region40
        $region39: #{base_gcn_forward.4} parent=35 // pred_region
          %s255 = smul.u32 8, %s14
          %p256 = scmp.lt.s32.totalorder %s255, 15
          %s257 = scalar_select %p256, %s255, 15
          %s258 = smul.addr %s257, 8
          %s259 = scalar_lea.vmem %s1, %s258
          %s260 = smul.u32 8, %s14
        $region40: #{base_gcn_forward.4} parent=35 // pred_fallthru
          _
        // Predicated region
        $region41: #{base_gcn_forward.4} parent=35 // pred_check
          %p261 = pneg %p81
        $region42: #{base_gcn_forward.4} parent=35 // pred_check_branch
          %263 = sbr.rel (%p261) target = $region44
        $region43: #{base_gcn_forward.4} parent=35 // pred_region
          %s264 = sand.u32 %s71, 1
          %s265 = sand.u32 %s71, 1
          %s266 = smul.addr %s265, 64
          %s267 = scalar_lea.vmem [#allocation4], %s266
          %s268 = smul.u32 2, %s14
          %s269 = smul.addr %s268, 4
          %s270 = scalar_lea.vmem %s2, %s269
          // Predicated region
          $region45: #{base_gcn_forward.4} parent=43 // pred_check
            _
          $region46: #{base_gcn_forward.4} parent=43 // pred_check_branch
            %272 = sbr.rel (0) target = $region48
          $region47: #{base_gcn_forward.4} parent=43 // pred_region
            // Predicated region
            $region49: #{base_gcn_forward.4} parent=47 // pred_check
              _
            $region50: #{base_gcn_forward.4} parent=47 // pred_check_branch
              %274 = sbr.rel (0) target = $region52
            $region51: #{base_gcn_forward.4} parent=47 // pred_region
              // Predicated region
              $region64: #{base_gcn_forward.4} parent=51 // pred_check
                _
              $region65: #{base_gcn_forward.4} parent=51 // pred_check_branch
                %304 = sbr.rel (0) target = $region67
              $region66: #{base_gcn_forward.4} parent=51 // pred_region
                loop: start=0, step=1, limit=1
                $region68: #{base_gcn_forward.4} parent=66 // loop_pre_header
                  _
                $region69: #{base_gcn_forward.4} parent=66 // loop_header
                  %s306 = sphi 0, %s310
                  %p307 = scmp.ge.s32.totalorder %s306, 1
                  %s311 = sphi %s270, %s270
                  %s312 = sphi %s267, %s267
                $region70: #{base_gcn_forward.4} parent=66 // loop_header_branch
                  %309 = sbr.rel (%p307) target = $region74
                $region71: #{base_gcn_forward.4} parent=66 // loop_body
                  %v313 = vld [vmem:[%s311] sm:$0xff]
                  %314 = vst [vmem:[%s312] sm:$0xff] %v313
                  %v315 = vld [vmem:[%s311 + $0x10] sm:$0xff]
                  %316 = vst [vmem:[%s312 + $0x8] sm:$0xff] %v315
                  %v317 = vld [vmem:[%s311 + $0x20] sm:$0xff]
                  %318 = vst [vmem:[%s312 + $0x10] sm:$0xff] %v317
                  %v319 = vld [vmem:[%s311 + $0x30] sm:$0xff]
                  %320 = vst [vmem:[%s312 + $0x18] sm:$0xff] %v319
                  %v321 = vld [vmem:[%s311 + $0x40] sm:$0xff]
                  %322 = vst [vmem:[%s312 + $0x20] sm:$0xff] %v321
                  %v323 = vld [vmem:[%s311 + $0x50] sm:$0xff]
                  %324 = vst [vmem:[%s312 + $0x28] sm:$0xff] %v323
                  %v325 = vld [vmem:[%s311 + $0x60] sm:$0xff]
                  %326 = vst [vmem:[%s312 + $0x30] sm:$0xff] %v325
                  %v327 = vld [vmem:[%s311 + $0x70] sm:$0xff]
                  %328 = vst [vmem:[%s312 + $0x38] sm:$0xff] %v327
                $region72: #{base_gcn_forward.4} parent=66 // loop_footer
                  %s310 = sadd.s32 1, %s306
                $region73: #{base_gcn_forward.4} parent=66 // loop_footer_branch
                  %305 = sbr.rel target = $region69
                $region74: #{base_gcn_forward.4} parent=66 // loop_exit
                  _
              $region67: #{base_gcn_forward.4} parent=51 // pred_fallthru
                _
              // Predicated region
              $region75: #{base_gcn_forward.4} parent=51 // pred_check
                _
              $region76: #{base_gcn_forward.4} parent=51 // pred_check_branch
                %330 = sbr.rel target = $region78
              $region77: #{base_gcn_forward.4} parent=51 // pred_region
                _
              $region78: #{base_gcn_forward.4} parent=51 // pred_fallthru
                _
            $region52: #{base_gcn_forward.4} parent=47 // pred_fallthru
              _
            // Predicated region
            $region53: #{base_gcn_forward.4} parent=47 // pred_check
              _
            $region54: #{base_gcn_forward.4} parent=47 // pred_check_branch
              %276 = sbr.rel target = $region56
            $region55: #{base_gcn_forward.4} parent=47 // pred_region
              %s278 = ssub.s32 256, 1
              loop: start=0, step=1, limit=1
              $region57: #{base_gcn_forward.4} parent=55 // loop_pre_header
                _
              $region58: #{base_gcn_forward.4} parent=55 // loop_header
                %s280 = sphi 0, %s284
                %p281 = scmp.ge.s32.totalorder %s280, 1
                %s285 = sphi %s270, %s270
                %s286 = sphi %s267, %s267
              $region59: #{base_gcn_forward.4} parent=55 // loop_header_branch
                %283 = sbr.rel (%p281) target = $region63
              $region60: #{base_gcn_forward.4} parent=55 // loop_body
                %v287 = vld [vmem:[%s285] sm:%s278]
                %288 = vst [vmem:[%s286] sm:%s278] %v287
                %v289 = vld [vmem:[%s285 + $0x10] sm:%s278]
                %290 = vst [vmem:[%s286 + $0x8] sm:%s278] %v289
                %v291 = vld [vmem:[%s285 + $0x20] sm:%s278]
                %292 = vst [vmem:[%s286 + $0x10] sm:%s278] %v291
                %v293 = vld [vmem:[%s285 + $0x30] sm:%s278]
                %294 = vst [vmem:[%s286 + $0x18] sm:%s278] %v293
                %v295 = vld [vmem:[%s285 + $0x40] sm:%s278]
                %296 = vst [vmem:[%s286 + $0x20] sm:%s278] %v295
                %v297 = vld [vmem:[%s285 + $0x50] sm:%s278]
                %298 = vst [vmem:[%s286 + $0x28] sm:%s278] %v297
                %v299 = vld [vmem:[%s285 + $0x60] sm:%s278]
                %300 = vst [vmem:[%s286 + $0x30] sm:%s278] %v299
                %v301 = vld [vmem:[%s285 + $0x70] sm:%s278]
                %302 = vst [vmem:[%s286 + $0x38] sm:%s278] %v301
              $region61: #{base_gcn_forward.4} parent=55 // loop_footer
                %s284 = sadd.s32 1, %s280
              $region62: #{base_gcn_forward.4} parent=55 // loop_footer_branch
                %279 = sbr.rel target = $region58
              $region63: #{base_gcn_forward.4} parent=55 // loop_exit
                _
            $region56: #{base_gcn_forward.4} parent=47 // pred_fallthru
              _
          $region48: #{base_gcn_forward.4} parent=43 // pred_fallthru
            _
          %331 = vnop
        $region44: #{base_gcn_forward.4} parent=35 // pred_fallthru
          _
        // Predicated region
        $region79: #{base_gcn_forward.4} parent=35 // pred_check
          %p332 = pneg %p107
        $region80: #{base_gcn_forward.4} parent=35 // pred_check_branch
          %334 = sbr.rel (%p332) target = $region82
        $region81: #{base_gcn_forward.4} parent=35 // pred_region
          %s335 = smul.u32 32, %s14
          %p336 = scmp.lt.s32.totalorder %s335, 63
          %s337 = scalar_select %p336, %s335, 63
          %s338 = smul.addr %s337, 4
          %s339 = scalar_lea.vmem %s3, %s338
          %s340 = smul.u32 32, %s14
        $region82: #{base_gcn_forward.4} parent=35 // pred_fallthru
          _
      $region36: #{base_gcn_forward.4} parent=5 // pred_fallthru
        _
      %p341 = scmp.le.s32.totalorder 1, %s14
      %p342 = scmp.lt.s32.totalorder %s14, 3
      %p343 = pnand %p341, %p342
      %p344 = pneg %p343
      // Predicated region
      $region83: #{base_gcn_forward.4} parent=5 // pred_check
        _
      $region84: #{base_gcn_forward.4} parent=5 // pred_check_branch
        %346 = sbr.rel (%p343) target = $region86
      $region85: #{base_gcn_forward.4} parent=5 // pred_region
        %s347 = ssub.s32 %s14, 1
        %s348 = sand.u32 %s74, 1
        %s349 = sand.u32 %s74, 1
        %s350 = smul.addr %s349, 64
        %s351 = scalar_lea.vmem [#allocation4], %s350
        // Predicated region
        $region87: #{base_gcn_forward.4} parent=85 // pred_check
          %p352 = pneg %p87
        $region88: #{base_gcn_forward.4} parent=85 // pred_check_branch
          %354 = sbr.rel (%p352) target = $region90
        $region89: #{base_gcn_forward.4} parent=85 // pred_region
          _
        $region90: #{base_gcn_forward.4} parent=85 // pred_fallthru
          _
        %p355 = pneg %p35
        %p356 = pneg %p32
        %s357 = smul.u32 8, %s19
        %p358 = scmp.lt.s32.totalorder %s357, 15
        %s359 = scalar_select %p358, %s357, 15
        %s360 = smul.addr %s359, 8
        %s361 = scalar_lea.vmem %s1, %s360
        %p362 = pneg %p61
        %p363 = pneg %p58
        %s364 = sand.u32 %s74, 1
        %s365 = sand.u32 %s74, 1
        %s366 = smul.addr %s365, 64
        %s367 = scalar_lea.vmem [#allocation4], %s366
        %p368 = pneg %p87
        %p369 = pneg %p84
        %s370 = smul.u32 32, %s19
        %p371 = scmp.lt.s32.totalorder %s370, 63
        %s372 = scalar_select %p371, %s370, 63
        %s373 = smul.addr %s372, 4
        %s374 = scalar_lea.vmem %s3, %s373
        %p375 = pneg %p113
        %p376 = pneg %p110
        %p377 = pneg %p134
        %p378 = pneg %p131
        %p379 = pneg %p155
        %p380 = pneg %p152
        %p381 = pneg %p176
        %p382 = pneg %p173
        %p383 = pneg %p197
        %p384 = pneg %p194
        %p385 = pneg %p218
        %p386 = pneg %p215
        %s387 = smul.u32 8, %s19
        %p388 = scmp.lt.s32.totalorder %s387, 15
        %s389 = scalar_select %p388, %s387, 15
        %s390 = smul.addr %s389, 8
        %s391 = scalar_lea.vmem %s1, %s390
        %s392 = smul.u32 8, %s19
        %s393 = smul.u32 2, %s19
        %s394 = smul.u32 32, %s19
        %p395 = scmp.lt.s32.totalorder %s394, 63
        %s396 = scalar_select %p395, %s394, 63
        %s397 = smul.addr %s396, 4
        %s398 = scalar_lea.vmem %s3, %s397
        %s399 = smul.u32 32, %s19
        %p401 = scmp.eq.s32.totalorder %s19, 0
        // Predicated region
        $region91: #{base_gcn_forward.4} parent=85 // pred_check
          %p402 = pneg %p401
        $region92: #{base_gcn_forward.4} parent=85 // pred_check_branch
          %404 = sbr.rel (%p402) target = $region94
        $region93: #{base_gcn_forward.4} parent=85 // pred_region
          %v405 = vld [vmem:[%s0] sm:$0xf]
          %v406 = vld [vmem:[%s0 + $0x4] sm:$0xf]
          %v407 = vld [vmem:[%s0 + $0x8] sm:$0xf]
          %v408 = vld [vmem:[%s0 + $0xc] sm:$0xf]
          %v409 = vld [vmem:[%s0 + $0x10] sm:$0xf]
          %v410 = vld [vmem:[%s0 + $0x14] sm:$0xf]
          %v411 = vld [vmem:[%s0 + $0x18] sm:$0xf]
          %v412 = vld [vmem:[%s0 + $0x1c] sm:$0xf]
          %v413 = vld [vmem:[%s4] sm:$0xf]
          %v414 = vld [vmem:[%s4 + $0x4] sm:$0xf]
          %v415 = vld [vmem:[%s4 + $0x8] sm:$0xf]
          %v416 = vld [vmem:[%s4 + $0xc] sm:$0xf]
          %v417 = vld [vmem:[%s5] sm:$0x1]
          %v419 = vperm.slane %v417, 0
          %v429 = vunpack.c.l.b16 %v405
          %v430 = vunpack.c.l.b16 %v406
          %v431 = vunpack.c.l.b16 %v407
          %v432 = vunpack.c.l.b16 %v408
          %v433 = vunpack.c.l.b16 %v409
          %v434 = vunpack.c.l.b16 %v410
          %v435 = vunpack.c.l.b16 %v411
          %v436 = vunpack.c.l.b16 %v412
          %v437 = vpack.c.b16 %v430, %v429
          %v438 = vpack.c.b16 %v432, %v431
          %v439 = vpack.c.b16 %v434, %v433
          %v440 = vpack.c.b16 %v436, %v435
          %v445 = vunpack.c.l.b16 %v413
          %v446 = vunpack.c.l.b16 %v414
          %v447 = vunpack.c.l.b16 %v415
          %v448 = vunpack.c.l.b16 %v416
          %v449 = vpack.c.b16 %v446, %v445
          %v450 = vpack.c.b16 %v448, %v447
          %vm453 = vcmask 261120
          %v455 = vsel %vm453, %v437, 0
          %v458 = vsel %vm453, %v438, 0
          %v461 = vsel %vm453, %v439, 0
          %v464 = vsel %vm453, %v440, 0
          %466 = vmatpush.bf16.msra.mxu0 0
          %467 = vmatpush.bf16.msra.mxu0 0
          %468 = vmatpush.bf16.msra.mxu0 0
          %469 = vmatpush.bf16.msra.mxu0 0
          %470 = vmatpush.bf16.msra.mxu0 0
          %471 = vmatpush.bf16.msra.mxu0 0
          %472 = vmatpush.bf16.msra.mxu0 %v450
          %473 = vmatpush.bf16.msra.mxu0 %v449
          %474 = vmatmul.bf16.gmra.mxu0 %v455
          %v475 = vpop.f32.mrf.mxu0
          %v476 = vadd.f32 %v419, %v475
          %v477 = vpop.f32.mrf.mxu0
          %v478 = vadd.f32 %v419, %v477
          %479 = vmatmul.bf16.gmra.mxu0 %v458
          %v480 = vpop.f32.mrf.mxu0
          %v481 = vadd.f32 %v419, %v480
          %v482 = vpop.f32.mrf.mxu0
          %v483 = vadd.f32 %v419, %v482
          %484 = vmatmul.bf16.gmra.mxu0 %v461
          %v485 = vpop.f32.mrf.mxu0
          %v486 = vadd.f32 %v419, %v485
          %v487 = vpop.f32.mrf.mxu0
          %v488 = vadd.f32 %v419, %v487
          %489 = vmatmul.bf16.gmra.mxu0 %v464
          %v490 = vpop.f32.mrf.mxu0
          %v491 = vadd.f32 %v419, %v490
          %v492 = vpop.f32.mrf.mxu0
          %v493 = vadd.f32 %v419, %v492
          %494 = vdwg.mxu0
          %v495 = vpack.c.bf16 %v476, %v476
          %v496 = vpack.c.bf16 %v478, %v478
          %v497 = vpack.c.bf16 %v481, %v481
          %v498 = vpack.c.bf16 %v483, %v483
          %v499 = vpack.c.bf16 %v486, %v486
          %v500 = vpack.c.bf16 %v488, %v488
          %v501 = vpack.c.bf16 %v491, %v491
          %v502 = vpack.c.bf16 %v493, %v493
          %vm503 = vcmask 257024
          %504 = vst.msk [vmem:[#allocation2] sm:$0xf] %vm503, %v495
          %505 = vst.msk [vmem:[#allocation2 + $0x4] sm:$0xf] %vm503, %v496
          %506 = vst.msk [vmem:[#allocation2 + $0x8] sm:$0xf] %vm503, %v497
          %507 = vst.msk [vmem:[#allocation2 + $0xc] sm:$0xf] %vm503, %v498
          %508 = vst.msk [vmem:[#allocation2 + $0x10] sm:$0xf] %vm503, %v499
          %509 = vst.msk [vmem:[#allocation2 + $0x14] sm:$0xf] %vm503, %v500
          %510 = vst.msk [vmem:[#allocation2 + $0x18] sm:$0xf] %vm503, %v501
          %511 = vst.msk [vmem:[#allocation2 + $0x1c] sm:$0xf] %vm503, %v502
          %512 = vst.msk [vmem:[#allocation3] sm:$0xff] %vm453, 0.0
          %513 = vst.msk [vmem:[#allocation3 + $0x8] sm:$0xff] %vm453, 0.0
          %514 = vst.msk [vmem:[#allocation3 + $0x10] sm:$0xff] %vm453, 0.0
          %515 = vst.msk [vmem:[#allocation3 + $0x18] sm:$0xff] %vm453, 0.0
          %516 = vst.msk [vmem:[#allocation3 + $0x20] sm:$0xff] %vm453, 0.0
          %517 = vst.msk [vmem:[#allocation3 + $0x28] sm:$0xff] %vm453, 0.0
          %518 = vst.msk [vmem:[#allocation3 + $0x30] sm:$0xff] %vm453, 0.0
          %519 = vst.msk [vmem:[#allocation3 + $0x38] sm:$0xff] %vm453, 0.0
        $region94: #{base_gcn_forward.4} parent=85 // pred_fallthru
          _
        %v520 = vld [vmem:[%s391] sm:$0xff]
        %v521 = vld [vmem:[%s391 + $0x8] sm:$0xff]
        %v522 = vld [vmem:[%s391 + $0x10] sm:$0xff]
        %v523 = vld [vmem:[%s391 + $0x18] sm:$0xff]
        %v524 = vld [vmem:[%s391 + $0x20] sm:$0xff]
        %v525 = vld [vmem:[%s391 + $0x28] sm:$0xff]
        %v526 = vld [vmem:[%s391 + $0x30] sm:$0xff]
        %v527 = vld [vmem:[%s391 + $0x38] sm:$0xff]
        %v528 = vunpack.c.0.s8 %v520
        %v529 = vunpack.c.1.s8 %v520
        %v530 = vunpack.c.2.s8 %v520
        %v531 = vunpack.c.3.s8 %v520
        %v532 = vunpack.c.0.s8 %v521
        %v533 = vunpack.c.1.s8 %v521
        %v534 = vunpack.c.2.s8 %v521
        %v535 = vunpack.c.3.s8 %v521
        %v536 = vunpack.c.0.s8 %v522
        %v537 = vunpack.c.1.s8 %v522
        %v538 = vunpack.c.2.s8 %v522
        %v539 = vunpack.c.3.s8 %v522
        %v540 = vunpack.c.0.s8 %v523
        %v541 = vunpack.c.1.s8 %v523
        %v542 = vunpack.c.2.s8 %v523
        %v543 = vunpack.c.3.s8 %v523
        %v544 = vunpack.c.0.s8 %v524
        %v545 = vunpack.c.1.s8 %v524
        %v546 = vunpack.c.2.s8 %v524
        %v547 = vunpack.c.3.s8 %v524
        %v548 = vunpack.c.0.s8 %v525
        %v549 = vunpack.c.1.s8 %v525
        %v550 = vunpack.c.2.s8 %v525
        %v551 = vunpack.c.3.s8 %v525
        %v552 = vunpack.c.0.s8 %v526
        %v553 = vunpack.c.1.s8 %v526
        %v554 = vunpack.c.2.s8 %v526
        %v555 = vunpack.c.3.s8 %v526
        %v556 = vunpack.c.0.s8 %v527
        %v557 = vunpack.c.1.s8 %v527
        %v558 = vunpack.c.2.s8 %v527
        %v559 = vunpack.c.3.s8 %v527
        %v560 = vcvt.s32.f32 %v528
        %v561 = vcvt.s32.f32 %v529
        %v562 = vcvt.s32.f32 %v530
        %v563 = vcvt.s32.f32 %v531
        %v564 = vcvt.s32.f32 %v532
        %v565 = vcvt.s32.f32 %v533
        %v566 = vcvt.s32.f32 %v534
        %v567 = vcvt.s32.f32 %v535
        %v568 = vcvt.s32.f32 %v536
        %v569 = vcvt.s32.f32 %v537
        %v570 = vcvt.s32.f32 %v538
        %v571 = vcvt.s32.f32 %v539
        %v572 = vcvt.s32.f32 %v540
        %v573 = vcvt.s32.f32 %v541
        %v574 = vcvt.s32.f32 %v542
        %v575 = vcvt.s32.f32 %v543
        %v576 = vcvt.s32.f32 %v544
        %v577 = vcvt.s32.f32 %v545
        %v578 = vcvt.s32.f32 %v546
        %v579 = vcvt.s32.f32 %v547
        %v580 = vcvt.s32.f32 %v548
        %v581 = vcvt.s32.f32 %v549
        %v582 = vcvt.s32.f32 %v550
        %v583 = vcvt.s32.f32 %v551
        %v584 = vcvt.s32.f32 %v552
        %v585 = vcvt.s32.f32 %v553
        %v586 = vcvt.s32.f32 %v554
        %v587 = vcvt.s32.f32 %v555
        %v588 = vcvt.s32.f32 %v556
        %v589 = vcvt.s32.f32 %v557
        %v590 = vcvt.s32.f32 %v558
        %v591 = vcvt.s32.f32 %v559
        %v592 = vpack.c.bf16 %v561, %v560
        %v593 = vpack.c.bf16 %v563, %v562
        %v594 = vpack.c.bf16 %v565, %v564
        %v595 = vpack.c.bf16 %v567, %v566
        %v596 = vpack.c.bf16 %v569, %v568
        %v597 = vpack.c.bf16 %v571, %v570
        %v598 = vpack.c.bf16 %v573, %v572
        %v599 = vpack.c.bf16 %v575, %v574
        %v600 = vpack.c.bf16 %v577, %v576
        %v601 = vpack.c.bf16 %v579, %v578
        %v602 = vpack.c.bf16 %v581, %v580
        %v603 = vpack.c.bf16 %v583, %v582
        %v604 = vpack.c.bf16 %v585, %v584
        %v605 = vpack.c.bf16 %v587, %v586
        %v606 = vpack.c.bf16 %v589, %v588
        %v607 = vpack.c.bf16 %v591, %v590
        %v608 = vld [vmem:[#allocation2] sm:$0xf]
        %v609 = vld [vmem:[#allocation2 + $0x4] sm:$0xf]
        %v610 = vld [vmem:[#allocation2 + $0x8] sm:$0xf]
        %v611 = vld [vmem:[#allocation2 + $0xc] sm:$0xf]
        %v612 = vld [vmem:[#allocation2 + $0x10] sm:$0xf]
        %v613 = vld [vmem:[#allocation2 + $0x14] sm:$0xf]
        %v614 = vld [vmem:[#allocation2 + $0x18] sm:$0xf]
        %v615 = vld [vmem:[#allocation2 + $0x1c] sm:$0xf]
        %v616 = vld [vmem:[%s398] sm:$0xf]
        %v617 = vld [vmem:[%s398 + $0x4] sm:$0xf]
        %v618 = vld [vmem:[%s398 + $0x8] sm:$0xf]
        %v619 = vld [vmem:[%s398 + $0xc] sm:$0xf]
        %v620 = vld [vmem:[%s398 + $0x10] sm:$0xf]
        %v621 = vld [vmem:[%s398 + $0x14] sm:$0xf]
        %v622 = vld [vmem:[%s398 + $0x18] sm:$0xf]
        %v623 = vld [vmem:[%s398 + $0x1c] sm:$0xf]
        %v624 = vld [vmem:[%s398 + $0x20] sm:$0xf]
        %v625 = vld [vmem:[%s398 + $0x24] sm:$0xf]
        %v626 = vld [vmem:[%s398 + $0x28] sm:$0xf]
        %v627 = vld [vmem:[%s398 + $0x2c] sm:$0xf]
        %v628 = vld [vmem:[%s398 + $0x30] sm:$0xf]
        %v629 = vld [vmem:[%s398 + $0x34] sm:$0xf]
        %v630 = vld [vmem:[%s398 + $0x38] sm:$0xf]
        %v631 = vld [vmem:[%s398 + $0x3c] sm:$0xf]
        %v632 = vld [vmem:[%s398 + $0x40] sm:$0xf]
        %v633 = vld [vmem:[%s398 + $0x44] sm:$0xf]
        %v634 = vld [vmem:[%s398 + $0x48] sm:$0xf]
        %v635 = vld [vmem:[%s398 + $0x4c] sm:$0xf]
        %v636 = vld [vmem:[%s398 + $0x50] sm:$0xf]
        %v637 = vld [vmem:[%s398 + $0x54] sm:$0xf]
        %v638 = vld [vmem:[%s398 + $0x58] sm:$0xf]
        %v639 = vld [vmem:[%s398 + $0x5c] sm:$0xf]
        %v640 = vld [vmem:[%s398 + $0x60] sm:$0xf]
        %v641 = vld [vmem:[%s398 + $0x64] sm:$0xf]
        %v642 = vld [vmem:[%s398 + $0x68] sm:$0xf]
        %v643 = vld [vmem:[%s398 + $0x6c] sm:$0xf]
        %v644 = vld [vmem:[%s398 + $0x70] sm:$0xf]
        %v645 = vld [vmem:[%s398 + $0x74] sm:$0xf]
        %v646 = vld [vmem:[%s398 + $0x78] sm:$0xf]
        %v647 = vld [vmem:[%s398 + $0x7c] sm:$0xf]
        %v648 = vunpack.c.l.bf16 %v616
        %v649 = vunpack.c.l.bf16 %v617
        %v650 = vunpack.c.l.bf16 %v618
        %v651 = vunpack.c.l.bf16 %v619
        %v652 = vunpack.c.l.bf16 %v620
        %v653 = vunpack.c.l.bf16 %v621
        %v654 = vunpack.c.l.bf16 %v622
        %v655 = vunpack.c.l.bf16 %v623
        %v656 = vunpack.c.l.bf16 %v624
        %v657 = vunpack.c.l.bf16 %v625
        %v658 = vunpack.c.l.bf16 %v626
        %v659 = vunpack.c.l.bf16 %v627
        %v660 = vunpack.c.l.bf16 %v628
        %v661 = vunpack.c.l.bf16 %v629
        %v662 = vunpack.c.l.bf16 %v630
        %v663 = vunpack.c.l.bf16 %v631
        %v664 = vunpack.c.l.bf16 %v632
        %v665 = vunpack.c.l.bf16 %v633
        %v666 = vunpack.c.l.bf16 %v634
        %v667 = vunpack.c.l.bf16 %v635
        %v668 = vunpack.c.l.bf16 %v636
        %v669 = vunpack.c.l.bf16 %v637
        %v670 = vunpack.c.l.bf16 %v638
        %v671 = vunpack.c.l.bf16 %v639
        %v672 = vunpack.c.l.bf16 %v640
        %v673 = vunpack.c.l.bf16 %v641
        %v674 = vunpack.c.l.bf16 %v642
        %v675 = vunpack.c.l.bf16 %v643
        %v676 = vunpack.c.l.bf16 %v644
        %v677 = vunpack.c.l.bf16 %v645
        %v678 = vunpack.c.l.bf16 %v646
        %v679 = vunpack.c.l.bf16 %v647
        %v688 = vunpack.c.l.b16 %v608
        %v689 = vunpack.c.l.b16 %v609
        %v690 = vunpack.c.l.b16 %v610
        %v691 = vunpack.c.l.b16 %v611
        %v692 = vunpack.c.l.b16 %v612
        %v693 = vunpack.c.l.b16 %v613
        %v694 = vunpack.c.l.b16 %v614
        %v695 = vunpack.c.l.b16 %v615
        %v696 = vpack.c.b16 %v689, %v688
        %v697 = vpack.c.b16 %v691, %v690
        %v698 = vpack.c.b16 %v693, %v692
        %v699 = vpack.c.b16 %v695, %v694
        %vm704 = vcmask 523264
        %v706 = vsel %vm704, %v592, 0
        %v709 = vsel %vm704, %v593, 0
        %v712 = vsel %vm704, %v594, 0
        %v715 = vsel %vm704, %v595, 0
        %v718 = vsel %vm704, %v596, 0
        %v721 = vsel %vm704, %v597, 0
        %v724 = vsel %vm704, %v598, 0
        %v727 = vsel %vm704, %v599, 0
        %v730 = vsel %vm704, %v600, 0
        %v733 = vsel %vm704, %v601, 0
        %v736 = vsel %vm704, %v602, 0
        %v739 = vsel %vm704, %v603, 0
        %v742 = vsel %vm704, %v604, 0
        %v745 = vsel %vm704, %v605, 0
        %v748 = vsel %vm704, %v606, 0
        %v751 = vsel %vm704, %v607, 0
        %753 = vmatpush.bf16.msra.mxu0 0
        %754 = vmatpush.bf16.msra.mxu0 0
        %755 = vmatpush.bf16.msra.mxu0 0
        %756 = vmatpush.bf16.msra.mxu0 0
        %757 = vmatpush.bf16.msra.mxu0 %v699
        %758 = vmatpush.bf16.msra.mxu0 %v698
        %759 = vmatpush.bf16.msra.mxu0 %v697
        %760 = vmatpush.bf16.msra.mxu0 %v696
        %761 = vmatmul.bf16.gmra.mxu0 %v706
        %v762 = vpop.f32.mrf.mxu0
        %v763 = vadd.f32 %v648, %v762
        %v764 = vpop.f32.mrf.mxu0
        %v765 = vadd.f32 %v649, %v764
        %766 = vmatmul.bf16.gmra.mxu0 %v709
        %v767 = vpop.f32.mrf.mxu0
        %v768 = vadd.f32 %v650, %v767
        %v769 = vpop.f32.mrf.mxu0
        %v770 = vadd.f32 %v651, %v769
        %771 = vmatmul.bf16.gmra.mxu0 %v712
        %v772 = vpop.f32.mrf.mxu0
        %v773 = vadd.f32 %v652, %v772
        %v774 = vpop.f32.mrf.mxu0
        %v775 = vadd.f32 %v653, %v774
        %776 = vmatmul.bf16.gmra.mxu0 %v715
        %v777 = vpop.f32.mrf.mxu0
        %v778 = vadd.f32 %v654, %v777
        %v779 = vpop.f32.mrf.mxu0
        %v780 = vadd.f32 %v655, %v779
        %781 = vmatmul.bf16.gmra.mxu0 %v718
        %v782 = vpop.f32.mrf.mxu0
        %v783 = vadd.f32 %v656, %v782
        %v784 = vpop.f32.mrf.mxu0
        %v785 = vadd.f32 %v657, %v784
        %786 = vmatmul.bf16.gmra.mxu0 %v721
        %v787 = vpop.f32.mrf.mxu0
        %v788 = vadd.f32 %v658, %v787
        %v789 = vpop.f32.mrf.mxu0
        %v790 = vadd.f32 %v659, %v789
        %791 = vmatmul.bf16.gmra.mxu0 %v724
        %v792 = vpop.f32.mrf.mxu0
        %v793 = vadd.f32 %v660, %v792
        %v794 = vpop.f32.mrf.mxu0
        %v795 = vadd.f32 %v661, %v794
        %796 = vmatmul.bf16.gmra.mxu0 %v727
        %v797 = vpop.f32.mrf.mxu0
        %v798 = vadd.f32 %v662, %v797
        %v799 = vpop.f32.mrf.mxu0
        %v800 = vadd.f32 %v663, %v799
        %801 = vmatmul.bf16.gmra.mxu0 %v730
        %v802 = vpop.f32.mrf.mxu0
        %v803 = vadd.f32 %v664, %v802
        %v804 = vpop.f32.mrf.mxu0
        %v805 = vadd.f32 %v665, %v804
        %806 = vmatmul.bf16.gmra.mxu0 %v733
        %v807 = vpop.f32.mrf.mxu0
        %v808 = vadd.f32 %v666, %v807
        %v809 = vpop.f32.mrf.mxu0
        %v810 = vadd.f32 %v667, %v809
        %811 = vmatmul.bf16.gmra.mxu0 %v736
        %v812 = vpop.f32.mrf.mxu0
        %v813 = vadd.f32 %v668, %v812
        %v814 = vpop.f32.mrf.mxu0
        %v815 = vadd.f32 %v669, %v814
        %816 = vmatmul.bf16.gmra.mxu0 %v739
        %v817 = vpop.f32.mrf.mxu0
        %v818 = vadd.f32 %v670, %v817
        %v819 = vpop.f32.mrf.mxu0
        %v820 = vadd.f32 %v671, %v819
        %821 = vmatmul.bf16.gmra.mxu0 %v742
        %v822 = vpop.f32.mrf.mxu0
        %v823 = vadd.f32 %v672, %v822
        %v824 = vpop.f32.mrf.mxu0
        %v825 = vadd.f32 %v673, %v824
        %826 = vmatmul.bf16.gmra.mxu0 %v745
        %v827 = vpop.f32.mrf.mxu0
        %v828 = vadd.f32 %v674, %v827
        %v829 = vpop.f32.mrf.mxu0
        %v830 = vadd.f32 %v675, %v829
        %831 = vmatmul.bf16.gmra.mxu0 %v748
        %v832 = vpop.f32.mrf.mxu0
        %v833 = vadd.f32 %v676, %v832
        %v834 = vpop.f32.mrf.mxu0
        %v835 = vadd.f32 %v677, %v834
        %836 = vmatmul.bf16.gmra.mxu0 %v751
        %v837 = vpop.f32.mrf.mxu0
        %v838 = vadd.f32 %v678, %v837
        %v839 = vpop.f32.mrf.mxu0
        %v840 = vadd.f32 %v679, %v839
        %841 = vdwg.mxu0
        %v842 = vmax.f32 %v763, 0.0
        %v843 = vmax.f32 %v765, 0.0
        %v844 = vmax.f32 %v768, 0.0
        %v845 = vmax.f32 %v770, 0.0
        %v846 = vmax.f32 %v773, 0.0
        %v847 = vmax.f32 %v775, 0.0
        %v848 = vmax.f32 %v778, 0.0
        %v849 = vmax.f32 %v780, 0.0
        %v850 = vmax.f32 %v783, 0.0
        %v851 = vmax.f32 %v785, 0.0
        %v852 = vmax.f32 %v788, 0.0
        %v853 = vmax.f32 %v790, 0.0
        %v854 = vmax.f32 %v793, 0.0
        %v855 = vmax.f32 %v795, 0.0
        %v856 = vmax.f32 %v798, 0.0
        %v857 = vmax.f32 %v800, 0.0
        %v858 = vmax.f32 %v803, 0.0
        %v859 = vmax.f32 %v805, 0.0
        %v860 = vmax.f32 %v808, 0.0
        %v861 = vmax.f32 %v810, 0.0
        %v862 = vmax.f32 %v813, 0.0
        %v863 = vmax.f32 %v815, 0.0
        %v864 = vmax.f32 %v818, 0.0
        %v865 = vmax.f32 %v820, 0.0
        %v866 = vmax.f32 %v823, 0.0
        %v867 = vmax.f32 %v825, 0.0
        %v868 = vmax.f32 %v828, 0.0
        %v869 = vmax.f32 %v830, 0.0
        %v870 = vmax.f32 %v833, 0.0
        %v871 = vmax.f32 %v835, 0.0
        %v872 = vmax.f32 %v838, 0.0
        %v873 = vmax.f32 %v840, 0.0
        %v874 = vld [vmem:[#allocation3] sm:$0xff]
        %v875 = vld [vmem:[#allocation3 + $0x8] sm:$0xff]
        %v876 = vld [vmem:[#allocation3 + $0x10] sm:$0xff]
        %v877 = vld [vmem:[#allocation3 + $0x18] sm:$0xff]
        %v878 = vld [vmem:[#allocation3 + $0x20] sm:$0xff]
        %v879 = vld [vmem:[#allocation3 + $0x28] sm:$0xff]
        %v880 = vld [vmem:[#allocation3 + $0x30] sm:$0xff]
        %v881 = vld [vmem:[#allocation3 + $0x38] sm:$0xff]
        %v882 = vld [vmem:[%s351] sm:$0xff]
        %v883 = vld [vmem:[%s351 + $0x8] sm:$0xff]
        %v884 = vld [vmem:[%s351 + $0x10] sm:$0xff]
        %v885 = vld [vmem:[%s351 + $0x18] sm:$0xff]
        %v886 = vld [vmem:[%s351 + $0x20] sm:$0xff]
        %v887 = vld [vmem:[%s351 + $0x28] sm:$0xff]
        %v888 = vld [vmem:[%s351 + $0x30] sm:$0xff]
        %v889 = vld [vmem:[%s351 + $0x38] sm:$0xff]
        %v890 = vpack.c.bf16 %v843, %v842
        %v891 = vpack.c.bf16 %v845, %v844
        %v892 = vpack.c.bf16 %v847, %v846
        %v893 = vpack.c.bf16 %v849, %v848
        %v894 = vpack.c.bf16 %v851, %v850
        %v895 = vpack.c.bf16 %v853, %v852
        %v896 = vpack.c.bf16 %v855, %v854
        %v897 = vpack.c.bf16 %v857, %v856
        %v898 = vpack.c.bf16 %v859, %v858
        %v899 = vpack.c.bf16 %v861, %v860
        %v900 = vpack.c.bf16 %v863, %v862
        %v901 = vpack.c.bf16 %v865, %v864
        %v902 = vpack.c.bf16 %v867, %v866
        %v903 = vpack.c.bf16 %v869, %v868
        %v904 = vpack.c.bf16 %v871, %v870
        %v905 = vpack.c.bf16 %v873, %v872
        %v914 = vunpack.c.l.b16 %v882
        %v915 = vunpack.c.h.b16 %v882
        %v916 = vunpack.c.l.b16 %v883
        %v917 = vunpack.c.h.b16 %v883
        %v918 = vunpack.c.l.b16 %v884
        %v919 = vunpack.c.h.b16 %v884
        %v920 = vunpack.c.l.b16 %v885
        %v921 = vunpack.c.h.b16 %v885
        %v922 = vunpack.c.l.b16 %v886
        %v923 = vunpack.c.h.b16 %v886
        %v924 = vunpack.c.l.b16 %v887
        %v925 = vunpack.c.h.b16 %v887
        %v926 = vunpack.c.l.b16 %v888
        %v927 = vunpack.c.h.b16 %v888
        %v928 = vunpack.c.l.b16 %v889
        %v929 = vunpack.c.h.b16 %v889
        %v930 = vpack.c.b16 %v916, %v914
        %v931 = vpack.c.b16 %v917, %v915
        %v932 = vpack.c.b16 %v920, %v918
        %v933 = vpack.c.b16 %v921, %v919
        %v934 = vpack.c.b16 %v924, %v922
        %v935 = vpack.c.b16 %v925, %v923
        %v936 = vpack.c.b16 %v928, %v926
        %v937 = vpack.c.b16 %v929, %v927
        %946 = vmatpush.bf16.msra.mxu0 %v897
        %947 = vmatpush.bf16.msra.mxu0 %v896
        %948 = vmatpush.bf16.msra.mxu0 %v895
        %949 = vmatpush.bf16.msra.mxu0 %v894
        %950 = vmatpush.bf16.msra.mxu0 %v893
        %951 = vmatpush.bf16.msra.mxu0 %v892
        %952 = vmatpush.bf16.msra.mxu0 %v891
        %953 = vmatpush.bf16.msra.mxu0 %v890
        %954 = vmatmul.bf16.gmra.mxu0 %v930
        %v955 = vpop.f32.mrf.mxu0
        %v956 = vadd.f32 0.0, %v955
        %v957 = vpop.f32.mrf.mxu0
        %v958 = vadd.f32 0.0, %v957
        %959 = vmatmul.bf16.gmra.mxu0 %v932
        %v960 = vpop.f32.mrf.mxu0
        %v961 = vadd.f32 0.0, %v960
        %v962 = vpop.f32.mrf.mxu0
        %v963 = vadd.f32 0.0, %v962
        %964 = vmatmul.bf16.gmra.mxu0 %v934
        %v965 = vpop.f32.mrf.mxu0
        %v966 = vadd.f32 0.0, %v965
        %v967 = vpop.f32.mrf.mxu0
        %v968 = vadd.f32 0.0, %v967
        %969 = vmatmul.bf16.gmra.mxu0 %v936
        %v970 = vpop.f32.mrf.mxu0
        %v971 = vadd.f32 0.0, %v970
        %v972 = vpop.f32.mrf.mxu0
        %v973 = vadd.f32 0.0, %v972
        %974 = vdwg.mxu0
        %975 = vmatpush.bf16.msra.mxu0 %v905
        %976 = vmatpush.bf16.msra.mxu0 %v904
        %977 = vmatpush.bf16.msra.mxu0 %v903
        %978 = vmatpush.bf16.msra.mxu0 %v902
        %979 = vmatpush.bf16.msra.mxu0 %v901
        %980 = vmatpush.bf16.msra.mxu0 %v900
        %981 = vmatpush.bf16.msra.mxu0 %v899
        %982 = vmatpush.bf16.msra.mxu0 %v898
        %983 = vmatmul.bf16.gmra.mxu0 %v931
        %v984 = vpop.f32.mrf.mxu0
        %v985 = vadd.f32 %v956, %v984
        %v986 = vpop.f32.mrf.mxu0
        %v987 = vadd.f32 %v958, %v986
        %988 = vmatmul.bf16.gmra.mxu0 %v933
        %v989 = vpop.f32.mrf.mxu0
        %v990 = vadd.f32 %v961, %v989
        %v991 = vpop.f32.mrf.mxu0
        %v992 = vadd.f32 %v963, %v991
        %993 = vmatmul.bf16.gmra.mxu0 %v935
        %v994 = vpop.f32.mrf.mxu0
        %v995 = vadd.f32 %v966, %v994
        %v996 = vpop.f32.mrf.mxu0
        %v997 = vadd.f32 %v968, %v996
        %998 = vmatmul.bf16.gmra.mxu0 %v937
        %v999 = vpop.f32.mrf.mxu0
        %v1000 = vadd.f32 %v971, %v999
        %v1001 = vpop.f32.mrf.mxu0
        %v1002 = vadd.f32 %v973, %v1001
        %1003 = vdwg.mxu0
        %v1004 = vadd.f32 %v874, %v985
        %v1005 = vadd.f32 %v875, %v987
        %v1006 = vadd.f32 %v876, %v990
        %v1007 = vadd.f32 %v877, %v992
        %v1008 = vadd.f32 %v878, %v995
        %v1009 = vadd.f32 %v879, %v997
        %v1010 = vadd.f32 %v880, %v1000
        %v1011 = vadd.f32 %v881, %v1002
        %vm1012 = vcmask 261120
        %1013 = vst.msk [vmem:[#allocation3] sm:$0xff] %vm1012, %v1004
        %1014 = vst.msk [vmem:[#allocation3 + $0x8] sm:$0xff] %vm1012, %v1005
        %1015 = vst.msk [vmem:[#allocation3 + $0x10] sm:$0xff] %vm1012, %v1006
        %1016 = vst.msk [vmem:[#allocation3 + $0x18] sm:$0xff] %vm1012, %v1007
        %1017 = vst.msk [vmem:[#allocation3 + $0x20] sm:$0xff] %vm1012, %v1008
        %1018 = vst.msk [vmem:[#allocation3 + $0x28] sm:$0xff] %vm1012, %v1009
        %1019 = vst.msk [vmem:[#allocation3 + $0x30] sm:$0xff] %vm1012, %v1010
        %1020 = vst.msk [vmem:[#allocation3 + $0x38] sm:$0xff] %vm1012, %v1011
        %p1021 = scmp.eq.s32.totalorder %s19, 1
        // Predicated region
        $region95: #{base_gcn_forward.4} parent=85 // pred_check
          %p1022 = pneg %p1021
        $region96: #{base_gcn_forward.4} parent=85 // pred_check_branch
          %1024 = sbr.rel (%p1022) target = $region98
        $region97: #{base_gcn_forward.4} parent=85 // pred_region
          %v1025 = vld [vmem:[#allocation3] sm:$0xff]
          %v1026 = vld [vmem:[#allocation3 + $0x8] sm:$0xff]
          %v1027 = vld [vmem:[#allocation3 + $0x10] sm:$0xff]
          %v1028 = vld [vmem:[#allocation3 + $0x18] sm:$0xff]
          %v1029 = vld [vmem:[#allocation3 + $0x20] sm:$0xff]
          %v1030 = vld [vmem:[#allocation3 + $0x28] sm:$0xff]
          %v1031 = vld [vmem:[#allocation3 + $0x30] sm:$0xff]
          %v1032 = vld [vmem:[#allocation3 + $0x38] sm:$0xff]
          %v1033 = vsel %vm1012, %v1025, 0.0
          %v1034 = vsel %vm1012, %v1026, 0.0
          %v1035 = vadd.f32 %v1033, %v1034
          %v1036 = vsel %vm1012, %v1027, 0.0
          %v1037 = vadd.f32 %v1035, %v1036
          %v1038 = vsel %vm1012, %v1028, 0.0
          %v1039 = vadd.f32 %v1037, %v1038
          %v1040 = vsel %vm1012, %v1029, 0.0
          %v1041 = vadd.f32 %v1039, %v1040
          %v1042 = vsel %vm1012, %v1030, 0.0
          %v1043 = vadd.f32 %v1041, %v1042
          %v1044 = vsel %vm1012, %v1031, 0.0
          %v1045 = vadd.f32 %v1043, %v1044
          %v1046 = vsel %vm1012, %v1032, 0.0
          %v1047 = vadd.f32 %v1045, %v1046
          %v1048 = vrot.slane %v1047, 4
          %v1049 = vadd.f32 %v1047, %v1048
          %v1050 = vrot.slane %v1049, 2
          %v1051 = vadd.f32 %v1049, %v1050
          %v1052 = vrot.slane %v1051, 1
          %v1053 = vadd.f32 %v1051, %v1052
          %v1054 = vrcp.pop 64.0
          %v1055 = vmul.f32 64.0, %v1054
          %v1056 = vsub.f32 1.0, %v1055
          %v1057 = vmul.f32 %v1054, %v1056
          %v1058 = vadd.f32 %v1054, %v1057
          %vm1059 = vweird.f32 %v1054
          %v1060 = vsel %vm1059, %v1054, %v1058
          %v1061 = vmul.f32 %v1053, %v1060
          %v1062 = vsub.f32 %v1025, %v1061
          %v1063 = vsub.f32 %v1026, %v1061
          %v1064 = vsub.f32 %v1027, %v1061
          %v1065 = vsub.f32 %v1028, %v1061
          %v1066 = vsub.f32 %v1029, %v1061
          %v1067 = vsub.f32 %v1030, %v1061
          %v1068 = vsub.f32 %v1031, %v1061
          %v1069 = vsub.f32 %v1032, %v1061
          %v1070 = vmul.f32 %v1062, %v1062
          %v1071 = vmul.f32 %v1063, %v1063
          %v1072 = vmul.f32 %v1064, %v1064
          %v1073 = vmul.f32 %v1065, %v1065
          %v1074 = vmul.f32 %v1066, %v1066
          %v1075 = vmul.f32 %v1067, %v1067
          %v1076 = vmul.f32 %v1068, %v1068
          %v1077 = vmul.f32 %v1069, %v1069
          %v1078 = vsel %vm1012, %v1070, 0.0
          %v1079 = vsel %vm1012, %v1071, 0.0
          %v1080 = vadd.f32 %v1078, %v1079
          %v1081 = vsel %vm1012, %v1072, 0.0
          %v1082 = vadd.f32 %v1080, %v1081
          %v1083 = vsel %vm1012, %v1073, 0.0
          %v1084 = vadd.f32 %v1082, %v1083
          %v1085 = vsel %vm1012, %v1074, 0.0
          %v1086 = vadd.f32 %v1084, %v1085
          %v1087 = vsel %vm1012, %v1075, 0.0
          %v1088 = vadd.f32 %v1086, %v1087
          %v1089 = vsel %vm1012, %v1076, 0.0
          %v1090 = vadd.f32 %v1088, %v1089
          %v1091 = vsel %vm1012, %v1077, 0.0
          %v1092 = vadd.f32 %v1090, %v1091
          %v1093 = vrot.slane %v1092, 4
          %v1094 = vadd.f32 %v1092, %v1093
          %v1095 = vrot.slane %v1094, 2
          %v1096 = vadd.f32 %v1094, %v1095
          %v1097 = vrot.slane %v1096, 1
          %v1098 = vadd.f32 %v1096, %v1097
          %v1099 = vmul.f32 %v1098, %v1060
          %v1100 = vadd.f32 %v1099, 1e-05
          %v1101 = vrsqrt.pop %v1100
          %v1102 = vmul.f32 %v1101, %v1100
          %v1103 = vmul.f32 %v1102, %v1101
          %v1104 = vmul.f32 0.5, %v1103
          %v1105 = vsub.f32 1.5, %v1104
          %v1106 = vmul.f32 %v1101, %v1105
          %vm1107 = vweird.f32 %v1100
          %vm1108 = vweird.f32 %v1101
          %vm1109 = vmor %vm1107, %vm1108
          %v1110 = vsel %vm1109, %v1101, %v1106
          %v1111 = vmul.f32 %v1062, %v1110
          %v1112 = vmul.f32 %v1063, %v1110
          %v1113 = vmul.f32 %v1064, %v1110
          %v1114 = vmul.f32 %v1065, %v1110
          %v1115 = vmul.f32 %v1066, %v1110
          %v1116 = vmul.f32 %v1067, %v1110
          %v1117 = vmul.f32 %v1068, %v1110
          %v1118 = vmul.f32 %v1069, %v1110
          %v1119 = vld [vmem:[%s6] sm:$0x1]
          %v1121 = vperm.slane %v1119, 0
          %v1123 = vmul.f32 %v1111, %v1121
          %v1124 = vmul.f32 %v1112, %v1121
          %v1125 = vmul.f32 %v1113, %v1121
          %v1126 = vmul.f32 %v1114, %v1121
          %v1127 = vmul.f32 %v1115, %v1121
          %v1128 = vmul.f32 %v1116, %v1121
          %v1129 = vmul.f32 %v1117, %v1121
          %v1130 = vmul.f32 %v1118, %v1121
          %v1131 = vld [vmem:[%s7] sm:$0x1]
          %v1133 = vperm.slane %v1131, 0
          %v1135 = vadd.f32 %v1123, %v1133
          %v1136 = vadd.f32 %v1124, %v1133
          %v1137 = vadd.f32 %v1125, %v1133
          %v1138 = vadd.f32 %v1126, %v1133
          %v1139 = vadd.f32 %v1127, %v1133
          %v1140 = vadd.f32 %v1128, %v1133
          %v1141 = vadd.f32 %v1129, %v1133
          %v1142 = vadd.f32 %v1130, %v1133
          %v1143 = vmax.f32 %v1135, 0.0
          %v1144 = vmax.f32 %v1136, 0.0
          %v1145 = vmax.f32 %v1137, 0.0
          %v1146 = vmax.f32 %v1138, 0.0
          %v1147 = vmax.f32 %v1139, 0.0
          %v1148 = vmax.f32 %v1140, 0.0
          %v1149 = vmax.f32 %v1141, 0.0
          %v1150 = vmax.f32 %v1142, 0.0
          %v1151 = vpack.c.bf16 %v1143, %v1143
          %v1152 = vpack.c.bf16 %v1144, %v1144
          %v1153 = vpack.c.bf16 %v1145, %v1145
          %v1154 = vpack.c.bf16 %v1146, %v1146
          %v1155 = vpack.c.bf16 %v1147, %v1147
          %v1156 = vpack.c.bf16 %v1148, %v1148
          %v1157 = vpack.c.bf16 %v1149, %v1149
          %v1158 = vpack.c.bf16 %v1150, %v1150
          %vm1159 = vcmask 257024
          %1160 = vst.msk [vmem:[%s8] sm:$0xf] %vm1159, %v1151
          %1161 = vst.msk [vmem:[%s8 + $0x4] sm:$0xf] %vm1159, %v1152
          %1162 = vst.msk [vmem:[%s8 + $0x8] sm:$0xf] %vm1159, %v1153
          %1163 = vst.msk [vmem:[%s8 + $0xc] sm:$0xf] %vm1159, %v1154
          %1164 = vst.msk [vmem:[%s8 + $0x10] sm:$0xf] %vm1159, %v1155
          %1165 = vst.msk [vmem:[%s8 + $0x14] sm:$0xf] %vm1159, %v1156
          %1166 = vst.msk [vmem:[%s8 + $0x18] sm:$0xf] %vm1159, %v1157
          %1167 = vst.msk [vmem:[%s8 + $0x1c] sm:$0xf] %vm1159, %v1158
        $region98: #{base_gcn_forward.4} parent=85 // pred_fallthru
          _
        // Predicated region
        $region99: #{base_gcn_forward.4} parent=85 // pred_check
          %p1168 = pneg %p215
        $region100: #{base_gcn_forward.4} parent=85 // pred_check_branch
          %1170 = sbr.rel (%p1168) target = $region102
        $region101: #{base_gcn_forward.4} parent=85 // pred_region
          _
        $region102: #{base_gcn_forward.4} parent=85 // pred_fallthru
          _
        // Predicated region
        $region103: #{base_gcn_forward.4} parent=85 // pred_check
          %p1171 = pneg %p215
        $region104: #{base_gcn_forward.4} parent=85 // pred_check_branch
          %1173 = sbr.rel (%p1171) target = $region106
        $region105: #{base_gcn_forward.4} parent=85 // pred_region
          _
        $region106: #{base_gcn_forward.4} parent=85 // pred_fallthru
          _
      $region86: #{base_gcn_forward.4} parent=5 // pred_fallthru
        _
      %p1174 = scmp.le.s32.totalorder 2, %s14
      // Predicated region
      $region107: #{base_gcn_forward.4} parent=5 // pred_check
        %p1175 = pneg %p1174
      $region108: #{base_gcn_forward.4} parent=5 // pred_check_branch
        %1177 = sbr.rel (%p1175) target = $region110
      $region109: #{base_gcn_forward.4} parent=5 // pred_region
        %s1178 = ssub.s32 %s14, 2
      $region110: #{base_gcn_forward.4} parent=5 // pred_fallthru
        _
    $region6: #{base_gcn_forward.4} parent=1 // loop_footer
      %s18 = sadd.s32 1, %s14
    $region7: #{base_gcn_forward.4} parent=1 // loop_footer_branch
      %13 = sbr.rel target = $region3
    $region8: #{base_gcn_forward.4} parent=1 // loop_exit
      _

</llo_original>
